<compile_context>
chip_gen: v7x
topology: tpu7x:2x2x1
jax: 0.10.0
libtpu: 0.0.40
codegen_flags: <defaults>
</compile_context>

<pallas_src>
import functools
import math

import jax
import jax.numpy as jnp
from jax.experimental import pallas as pl
from jax.experimental.pallas import tpu as pltpu

_BN_EPS = 1e-5


# -----------------------------------------------------------------------------
# Fused GEMM (+ per-channel scale/bias) (+ residual) (+ ReLU) Pallas kernels.
# -----------------------------------------------------------------------------
def _gemm_kernel(x_ref, w_ref, s_ref, b_ref, o_ref, *, relu):
    acc = jnp.dot(x_ref[...], w_ref[...],
                  preferred_element_type=jnp.float32,
                  precision=jax.lax.Precision.HIGHEST)
    acc = acc * s_ref[...] + b_ref[...]
    if relu:
        acc = jnp.maximum(acc, 0.0)
    o_ref[...] = acc.astype(o_ref.dtype)


def _gemm_res_kernel(x_ref, w_ref, s_ref, b_ref, r_ref, o_ref, *, relu):
    acc = jnp.dot(x_ref[...], w_ref[...],
                  preferred_element_type=jnp.float32,
                  precision=jax.lax.Precision.HIGHEST)
    acc = acc * s_ref[...] + b_ref[...] + r_ref[...].astype(jnp.float32)
    if relu:
        acc = jnp.maximum(acc, 0.0)
    o_ref[...] = acc.astype(o_ref.dtype)


def fused_gemm(x, w, scale, bias, residual=None, *, relu, tile_m=256):
    """out = act((x @ w) * scale + bias [+ residual]);  x:[M,K]  w:[K,C]."""
    m, k = x.shape
    kw, c = w.shape
    assert k == kw, (k, kw)

    # Tile M so the BlockSpec pipeline double-buffers; fall back to one
    # full-extent block for small / ragged problems (full dims are legal).
    if m % tile_m != 0:
        tile_m = m
    grid = (m // tile_m,)

    scale2 = scale.reshape(1, c).astype(jnp.float32)
    bias2 = bias.reshape(1, c).astype(jnp.float32)

    in_specs = [
        pl.BlockSpec((tile_m, k), lambda i: (i, 0)),
        pl.BlockSpec((k, c), lambda i: (0, 0)),
        pl.BlockSpec((1, c), lambda i: (0, 0)),
        pl.BlockSpec((1, c), lambda i: (0, 0)),
    ]
    args = [x, w, scale2, bias2]
    if residual is not None:
        in_specs.append(pl.BlockSpec((tile_m, c), lambda i: (i, 0)))
        args.append(residual)
        kernel = functools.partial(_gemm_res_kernel, relu=relu)
    else:
        kernel = functools.partial(_gemm_kernel, relu=relu)

    return pl.pallas_call(
        kernel,
        out_shape=jax.ShapeDtypeStruct((m, c), x.dtype),
        grid=grid,
        in_specs=in_specs,
        out_specs=pl.BlockSpec((tile_m, c), lambda i: (i, 0)),
        compiler_params=pltpu.CompilerParams(
            dimension_semantics=("parallel",)),
    )(*args)


# -----------------------------------------------------------------------------
# Conv / residual-block / ResNet forward built on the fused kernel.
# -----------------------------------------------------------------------------
def _im2col(x_nhwc, ksize, stride):
    """Extract k*k shifted views of an (already padded) NHWC tensor."""
    n, hp, wp, c = x_nhwc.shape
    ho = (hp - ksize) // stride + 1
    wo = (wp - ksize) // stride + 1
    cols = []
    for dy in range(ksize):
        for dx in range(ksize):
            cols.append(x_nhwc[:, dy:dy + stride * (ho - 1) + 1:stride,
                               dx:dx + stride * (wo - 1) + 1:stride, :])
    patches = jnp.concatenate(cols, axis=-1)           # [N, Ho, Wo, k*k*C]
    return patches.reshape(n * ho * wo, ksize * ksize * c), (n, ho, wo)


def conv_bn_act(x_nhwc, w_hwio, conv_b, bn, *, stride, pad, relu, residual=None):
    """Conv2d (+BN) (+residual) (+ReLU) as one fused Pallas GEMM kernel."""
    kh, kw, cin, cout = w_hwio.shape
    if pad:
        x_nhwc = jnp.pad(x_nhwc, ((0, 0), (pad, pad), (pad, pad), (0, 0)))
    patches, (n, ho, wo) = _im2col(x_nhwc, kh, stride)

    if bn is not None:   # fold inference BN + conv bias into scale/bias epilogue
        s = bn["gamma"] * jax.lax.rsqrt(bn["var"] + _BN_EPS)
        scale = s
        bias = (conv_b - bn["mean"]) * s + bn["beta"]
    else:
        scale = jnp.ones((cout,), jnp.float32)
        bias = conv_b

    w_mat = w_hwio.reshape(kh * kw * cin, cout)         # HWIO -> [K, Cout]
    res2d = None if residual is None else residual.reshape(n * ho * wo, cout)
    y = fused_gemm(patches, w_mat, scale, bias, res2d, relu=relu)
    return y.reshape(n, ho, wo, cout)


def residual_blk_forward(x, p):
    y = conv_bn_act(x, p["w1"], p["b1"], p["bn1"],
                    stride=p["stride"], pad=1, relu=True)
    if p["w3"] is not None:
        shortcut = conv_bn_act(x, p["w3"], p["b3"], None,
                               stride=p["stride"], pad=0, relu=False)
    else:
        shortcut = x
    # conv2 + bn2 + residual add + final ReLU fused into a single kernel.
    return conv_bn_act(y, p["w2"], p["b2"], p["bn2"],
                       stride=1, pad=1, relu=True, residual=shortcut)


def resnet_forward(x_nchw, params):
    x = jnp.transpose(x_nchw, (0, 2, 3, 1))             # NCHW -> NHWC
    y = conv_bn_act(x, params["stem_w"], params["stem_b"], params["stem_bn"],
                    stride=1, pad=1, relu=True)
    for blk in params["blocks"]:
        y = residual_blk_forward(y, blk)
    feat = jnp.mean(y, axis=(1, 2))                     # AdaptiveAvgPool2d + Flatten
    ones = jnp.ones((params["fc_w"].shape[1],), jnp.float32)
    return fused_gemm(feat, params["fc_w"], ones, params["fc_b"], relu=False)


# -----------------------------------------------------------------------------
# Parameter construction mirroring the PyTorch module structure.
# -----------------------------------------------------------------------------
def _conv_init(key, kh, kw, cin, cout):
    k_w, k_b = jax.random.split(key)
    w = jax.random.normal(k_w, (kh, kw, cin, cout), jnp.float32) / math.sqrt(kh * kw * cin)
    b = 0.01 * jax.random.normal(k_b, (cout,), jnp.float32)
    return w, b


def _bn_init(key, c):
    kg, kb, km, kv = jax.random.split(key, 4)
    return dict(
        gamma=1.0 + 0.1 * jax.random.normal(kg, (c,), jnp.float32),
        beta=0.1 * jax.random.normal(kb, (c,), jnp.float32),
        mean=0.1 * jax.random.normal(km, (c,), jnp.float32),
        var=1.0 + jnp.abs(jax.random.normal(kv, (c,), jnp.float32)),
    )


def _residual_blk_init(key, cin, cout, need_1x1, stride):
    k1, k2, k3, k4, k5 = jax.random.split(key, 5)
    w1, b1 = _conv_init(k1, 3, 3, cin, cout)
    w2, b2 = _conv_init(k2, 3, 3, cout, cout)
    blk = dict(w1=w1, b1=b1, bn1=_bn_init(k3, cout),
               w2=w2, b2=b2, bn2=_bn_init(k4, cout),
               stride=stride, w3=None, b3=None)
    if need_1x1:
        blk["w3"], blk["b3"] = _conv_init(k5, 1, 1, cin, cout)
    return blk


def init_resnet_params(key, in_channels, num_classes, n):
    keys = iter(jax.random.split(key, 3 * n + 4))
    params = {}
    params["stem_w"], params["stem_b"] = _conv_init(next(keys), 3, 3, in_channels, 16)
    params["stem_bn"] = _bn_init(next(keys), 16)

    blocks = []

    def stage(num_blks, cin, cout, need_1x1, stride):
        for _ in range(num_blks):
            blocks.append(_residual_blk_init(next(keys), cin, cout, need_1x1, stride))
            stride, need_1x1, cin = 1, False, cout

    stage(n, 16, 16, False, 1)
    stage(n, 16, 32, True, 2)
    stage(n, 32, 64, True, 2)
    params["blocks"] = blocks

    k_w, k_b = jax.random.split(next(keys))
    params["fc_w"] = jax.random.normal(k_w, (64, num_classes), jnp.float32) / math.sqrt(64)
    params["fc_b"] = 0.01 * jax.random.normal(k_b, (num_classes,), jnp.float32)
    return params


# -----------------------------------------------------------------------------
# Pure-JAX (XLA) reference for correctness checking.
# -----------------------------------------------------------------------------
def _ref_conv(x, w, b, stride, pad):
    out = jax.lax.conv_general_dilated(
        x, w, window_strides=(stride, stride),
        padding=((pad, pad), (pad, pad)),
        dimension_numbers=("NHWC", "HWIO", "NHWC"),
        precision=jax.lax.Precision.HIGHEST)
    return out + b


def _ref_bn(x, bn):
    s = bn["gamma"] * jax.lax.rsqrt(bn["var"] + _BN_EPS)
    return (x - bn["mean"]) * s + bn["beta"]


def resnet_forward_ref(x_nchw, params):
    x = jnp.transpose(x_nchw, (0, 2, 3, 1))
    y = jax.nn.relu(_ref_bn(_ref_conv(x, params["stem_w"], params["stem_b"], 1, 1),
                            params["stem_bn"]))
    for p in params["blocks"]:
        z = jax.nn.relu(_ref_bn(_ref_conv(y, p["w1"], p["b1"], p["stride"], 1), p["bn1"]))
        z = _ref_bn(_ref_conv(z, p["w2"], p["b2"], 1, 1), p["bn2"])
        sc = _ref_conv(y, p["w3"], p["b3"], p["stride"], 0) if p["w3"] is not None else y
        y = jax.nn.relu(z + sc)
    feat = jnp.mean(y, axis=(1, 2))
    return jnp.dot(feat, params["fc_w"],
                   precision=jax.lax.Precision.HIGHEST) + params["fc_b"]


if __name__ == "__main__":
    root = jax.random.PRNGKey(0)
    k_x, k_p = jax.random.split(root)

    in_channels, num_classes, n_blks = 3, 10, 2
    x = jax.random.normal(k_x, (2, in_channels, 16, 16), jnp.float32)
    params = init_resnet_params(k_p, in_channels, num_classes, n_blks)

    logits = resnet_forward(x, params)
    logits = jax.block_until_ready(logits)
    assert logits.shape == (2, num_classes)
    assert logits.dtype == jnp.float32

    ref = jax.block_until_ready(resnet_forward_ref(x, params))
    assert bool(jnp.allclose(logits, ref, rtol=5e-3, atol=5e-3)), (logits, ref)

    print("KERNEL_OK")
</pallas_src>

<mosaic_0001>
module attributes {stable_mosaic.version = 11 : i64} {
  func.func @_gemm_kernel(%arg0: i32, %arg1: memref<256x27xf32, #tpu.memory_space<vmem>>, %arg2: memref<27x16xf32, #tpu.memory_space<vmem>>, %arg3: memref<1x16xf32, #tpu.memory_space<vmem>>, %arg4: memref<1x16xf32, #tpu.memory_space<vmem>>, %arg5: memref<256x16xf32, #tpu.memory_space<vmem>>) attributes {dimension_semantics = [#tpu.dimension_semantics<parallel>], iteration_bounds = array<i64: 2>, scalar_prefetch = 0 : i64, scratch_operands = 0 : i64, tpu.core_type = #tpu.core_type<tc>, window_params = [{transform_indices = @transform_0, window_bounds = array<i64: 256, 27>}, {pipeline_mode = #tpu.pipeline_mode<synchronous>, transform_indices = @transform_1, window_bounds = array<i64: 27, 16>}, {pipeline_mode = #tpu.pipeline_mode<synchronous>, transform_indices = @transform_2, window_bounds = array<i64: 1, 16>}, {pipeline_mode = #tpu.pipeline_mode<synchronous>, transform_indices = @transform_3, window_bounds = array<i64: 1, 16>}, {transform_indices = @transform_4, window_bounds = array<i64: 256, 16>}]} {
    %c0 = arith.constant 0 : index
    %c0_0 = arith.constant 0 : index
    %0 = vector.load %arg1[%c0, %c0_0] : memref<256x27xf32, #tpu.memory_space<vmem>>, vector<256x27xf32>
    %c0_1 = arith.constant 0 : index
    %c0_2 = arith.constant 0 : index
    %1 = vector.load %arg2[%c0_1, %c0_2] : memref<27x16xf32, #tpu.memory_space<vmem>>, vector<27x16xf32>
    %cst = arith.constant dense<0.000000e+00> : vector<256x16xf32>
    %2 = tpu.matmul %0, %1, %cst {dimension_numbers = #tpu.dot_dimension_numbers<[1], [0], [0], [1], [0, 0, 1, 1], [], []>, precision = #tpu.contract_precision<fp32>} : vector<256x27xf32>, vector<27x16xf32>, vector<256x16xf32> -> vector<256x16xf32>
    %c0_3 = arith.constant 0 : index
    %c0_4 = arith.constant 0 : index
    %3 = vector.load %arg3[%c0_3, %c0_4] : memref<1x16xf32, #tpu.memory_space<vmem>>, vector<1x16xf32>
    %4 = vector.broadcast %3 : vector<1x16xf32> to vector<256x16xf32>
    %5 = arith.mulf %2, %4 : vector<256x16xf32>
    %c0_5 = arith.constant 0 : index
    %c0_6 = arith.constant 0 : index
    %6 = vector.load %arg4[%c0_5, %c0_6] : memref<1x16xf32, #tpu.memory_space<vmem>>, vector<1x16xf32>
    %7 = vector.broadcast %6 : vector<1x16xf32> to vector<256x16xf32>
    %8 = arith.addf %5, %7 : vector<256x16xf32>
    %cst_7 = arith.constant 0.000000e+00 : f32
    %9 = vector.broadcast %cst_7 : f32 to vector<256x16xf32>
    %10 = arith.maximumf %8, %9 : vector<256x16xf32>
    %c0_8 = arith.constant 0 : index
    %c0_9 = arith.constant 0 : index
    %11 = vector.load %arg5[%c0_8, %c0_9] : memref<256x16xf32, #tpu.memory_space<vmem>>, vector<256x16xf32>
    tpu.vector_store %arg5[%c0_8, %c0_9], %10 {strides = array<i32>} : memref<256x16xf32, #tpu.memory_space<vmem>>, vector<256x16xf32>,
    return
  }
  func.func @transform_0(%arg0: i32) -> (i32, i32) {
    %c0_i32 = arith.constant 0 : i32
    %c0_i32_0 = arith.constant 0 : i32
    return %arg0, %c0_i32 : i32, i32
  }
  func.func @transform_1(%arg0: i32) -> (i32, i32) {
    %c0_i32 = arith.constant 0 : i32
    %c0_i32_0 = arith.constant 0 : i32
    %c0_i32_1 = arith.constant 0 : i32
    return %c0_i32, %c0_i32_0 : i32, i32
  }
  func.func @transform_2(%arg0: i32) -> (i32, i32) {
    %c0_i32 = arith.constant 0 : i32
    %c0_i32_0 = arith.constant 0 : i32
    %c0_i32_1 = arith.constant 0 : i32
    return %c0_i32, %c0_i32_0 : i32, i32
  }
  func.func @transform_3(%arg0: i32) -> (i32, i32) {
    %c0_i32 = arith.constant 0 : i32
    %c0_i32_0 = arith.constant 0 : i32
    %c0_i32_1 = arith.constant 0 : i32
    return %c0_i32, %c0_i32_0 : i32, i32
  }
  func.func @transform_4(%arg0: i32) -> (i32, i32) {
    %c0_i32 = arith.constant 0 : i32
    %c0_i32_0 = arith.constant 0 : i32
    return %arg0, %c0_i32 : i32, i32
  }
}

</mosaic_0001>

<llo_original>
// kernel: tpu_custom_call.1
$region0: #{tpu_custom_call.1}
  #allocation0 [shape = 'u32[]', space=smem, size = 0x4, offset = 0x4, fixed_abs, tag = 'smem constant byte address 0x4 - core index']
  #allocation1 [shape = 'u32[144,128]{1,0:T(1,128)}', space=vmem, size = 0x12000, scoped, tag = 'internal scratch']
  %s0 = inlined_call_operand.vmem [shape: f32[512,27], index: 0, kind: input, shape index: {}]
  %s1 = inlined_call_operand.vmem [shape: f32[27,16], index: 1, kind: input, shape index: {}]
  %s2 = inlined_call_operand.vmem [shape: f32[1,16], index: 2, kind: input, shape index: {}]
  %s3 = inlined_call_operand.vmem [shape: f32[1,16], index: 3, kind: input, shape index: {}]
  %s4 = inlined_call_operand.vmem [shape: f32[512,16], index: 4, kind: output, shape index: {}]
  %s5 = sld [smem:[#allocation0]]
  $region49: #{tpu_custom_call.1} parent=0
    _
  %s7 = ssub.s32 1, %s5
  %s8 = scalar_select 0, %s7, %s5
  loop: start=0, step=1, limit=4
  $region2: #{tpu_custom_call.1} parent=0 // loop_pre_header
    _
  $region3: #{tpu_custom_call.1} parent=0 // loop_header
    %s10 = sphi 0, %s14
    %p11 = scmp.ge.s32.totalorder %s10, 4
    %s20 = sphi 0, %s22
    %s23 = sphi 0, %s20
    %s24 = sphi 0, %s23
    %s40 = sphi 0, %s24
    %s44 = sphi 0, %s44
    %s46 = sphi 0, %s44
    %s47 = sphi 0, %s46
    %s61 = sphi 0, %s47
    %s65 = sphi 0, %s65
    %s67 = sphi 0, %s65
    %s68 = sphi 0, %s67
    %s82 = sphi 0, %s68
    %s86 = sphi 0, %s86
    %s88 = sphi 0, %s86
    %s89 = sphi 0, %s88
    %s103 = sphi 0, %s89
    %s109 = sphi 0, %s111
    %s112 = sphi 0, %s109
    %s113 = sphi 0, %s112
    %s129 = sphi 0, %s113
  $region4: #{tpu_custom_call.1} parent=0 // loop_header_branch
    %13 = sbr.rel (%p11) target = $region8
  $region5: #{tpu_custom_call.1} parent=0 // loop_body
    %s15 = ssub.s32 %s10, 1
    %s16 = ssub.s32 %s10, 2
    %s17 = sadd.s32 %s10, 1
    %s18 = ssub.s32 %s10, %s17
    %p19 = scmp.eq.s32.totalorder %s18, 0
    %s21 = sadd.s32 %s20, 1
    %s22 = scalar_select %p19, %s20, %s21
    %p25 = pneg %p19
    %p26 = scmp.eq.s32.totalorder %s10, 1
    %p27 = por %p25, %p26
    %p28 = scmp.ne.s32.totalorder %s20, %s23
    %p29 = scmp.eq.s32.totalorder %s10, 0
    %p30 = por %p28, %p29
    %p31 = scmp.ne.s32.totalorder %s20, %s23
    %p32 = scmp.eq.s32.totalorder %s15, 1
    %p33 = por %p31, %p32
    %p34 = scmp.ne.s32.totalorder %s23, %s24
    %p35 = scmp.eq.s32.totalorder %s15, 0
    %p36 = por %p34, %p35
    %p37 = scmp.ne.s32.totalorder %s23, %s24
    %p38 = scmp.eq.s32.totalorder %s16, 1
    %p39 = por %p37, %p38
    %p41 = scmp.ne.s32.totalorder %s24, %s40
    %p42 = scmp.eq.s32.totalorder %s16, 0
    %p43 = por %p41, %p42
    %s45 = sadd.s32 %s44, 1
    %p48 = scmp.eq.s32.totalorder %s10, 1
    %p49 = scmp.ne.s32.totalorder %s44, %s46
    %p50 = scmp.eq.s32.totalorder %s10, 0
    %p51 = por %p49, %p50
    %p52 = scmp.ne.s32.totalorder %s44, %s46
    %p53 = scmp.eq.s32.totalorder %s15, 1
    %p54 = por %p52, %p53
    %p55 = scmp.ne.s32.totalorder %s46, %s47
    %p56 = scmp.eq.s32.totalorder %s15, 0
    %p57 = por %p55, %p56
    %p58 = scmp.ne.s32.totalorder %s46, %s47
    %p59 = scmp.eq.s32.totalorder %s16, 1
    %p60 = por %p58, %p59
    %p62 = scmp.ne.s32.totalorder %s47, %s61
    %p63 = scmp.eq.s32.totalorder %s16, 0
    %p64 = por %p62, %p63
    %s66 = sadd.s32 %s65, 1
    %p69 = scmp.eq.s32.totalorder %s10, 1
    %p70 = scmp.ne.s32.totalorder %s65, %s67
    %p71 = scmp.eq.s32.totalorder %s10, 0
    %p72 = por %p70, %p71
    %p73 = scmp.ne.s32.totalorder %s65, %s67
    %p74 = scmp.eq.s32.totalorder %s15, 1
    %p75 = por %p73, %p74
    %p76 = scmp.ne.s32.totalorder %s67, %s68
    %p77 = scmp.eq.s32.totalorder %s15, 0
    %p78 = por %p76, %p77
    %p79 = scmp.ne.s32.totalorder %s67, %s68
    %p80 = scmp.eq.s32.totalorder %s16, 1
    %p81 = por %p79, %p80
    %p83 = scmp.ne.s32.totalorder %s68, %s82
    %p84 = scmp.eq.s32.totalorder %s16, 0
    %p85 = por %p83, %p84
    %s87 = sadd.s32 %s86, 1
    %p90 = scmp.eq.s32.totalorder %s10, 1
    %p91 = scmp.ne.s32.totalorder %s86, %s88
    %p92 = scmp.eq.s32.totalorder %s10, 0
    %p93 = por %p91, %p92
    %p94 = scmp.ne.s32.totalorder %s86, %s88
    %p95 = scmp.eq.s32.totalorder %s15, 1
    %p96 = por %p94, %p95
    %p97 = scmp.ne.s32.totalorder %s88, %s89
    %p98 = scmp.eq.s32.totalorder %s15, 0
    %p99 = por %p97, %p98
    %p100 = scmp.ne.s32.totalorder %s88, %s89
    %p101 = scmp.eq.s32.totalorder %s16, 1
    %p102 = por %p100, %p101
    %p104 = scmp.ne.s32.totalorder %s89, %s103
    %p105 = scmp.eq.s32.totalorder %s16, 0
    %p106 = por %p104, %p105
    %s107 = ssub.s32 %s10, %s17
    %p108 = scmp.eq.s32.totalorder %s107, 0
    %s110 = sadd.s32 %s109, 1
    %s111 = scalar_select %p108, %s109, %s110
    %p114 = pneg %p108
    %p115 = scmp.eq.s32.totalorder %s10, 1
    %p116 = por %p114, %p115
    %p117 = scmp.ne.s32.totalorder %s109, %s112
    %p118 = scmp.eq.s32.totalorder %s10, 0
    %p119 = por %p117, %p118
    %p120 = scmp.ne.s32.totalorder %s109, %s112
    %p121 = scmp.eq.s32.totalorder %s15, 1
    %p122 = por %p120, %p121
    %p123 = scmp.ne.s32.totalorder %s112, %s113
    %p124 = scmp.eq.s32.totalorder %s15, 0
    %p125 = por %p123, %p124
    %p126 = scmp.ne.s32.totalorder %s112, %s113
    %p127 = scmp.eq.s32.totalorder %s16, 1
    %p128 = por %p126, %p127
    %p130 = scmp.ne.s32.totalorder %s113, %s129
    %p131 = scmp.eq.s32.totalorder %s16, 0
    %p132 = por %p130, %p131
    %p133 = scmp.le.s32.totalorder 1, %s10
    %p134 = scmp.lt.s32.totalorder %s10, 3
    %p135 = pnand %p133, %p134
    %p136 = pneg %p135
    // Predicated region
    $region9: #{tpu_custom_call.1} parent=5 // pred_check
      _
    $region10: #{tpu_custom_call.1} parent=5 // pred_check_branch
      %138 = sbr.rel (%p135) target = $region12
    $region11: #{tpu_custom_call.1} parent=5 // pred_region
      %s139 = ssub.s32 %s10, 1
      // Predicated region
      $region13: #{tpu_custom_call.1} parent=11 // pred_check
        %p140 = pneg %p57
      $region14: #{tpu_custom_call.1} parent=11 // pred_check_branch
        %142 = sbr.rel (%p140) target = $region16
      $region15: #{tpu_custom_call.1} parent=11 // pred_region
        _
      $region16: #{tpu_custom_call.1} parent=11 // pred_fallthru
        _
      // Predicated region
      $region17: #{tpu_custom_call.1} parent=11 // pred_check
        %p143 = pneg %p78
      $region18: #{tpu_custom_call.1} parent=11 // pred_check_branch
        %145 = sbr.rel (%p143) target = $region20
      $region19: #{tpu_custom_call.1} parent=11 // pred_region
        _
      $region20: #{tpu_custom_call.1} parent=11 // pred_fallthru
        _
      // Predicated region
      $region21: #{tpu_custom_call.1} parent=11 // pred_check
        %p146 = pneg %p99
      $region22: #{tpu_custom_call.1} parent=11 // pred_check_branch
        %148 = sbr.rel (%p146) target = $region24
      $region23: #{tpu_custom_call.1} parent=11 // pred_region
        _
      $region24: #{tpu_custom_call.1} parent=11 // pred_fallthru
        _
    $region12: #{tpu_custom_call.1} parent=5 // pred_fallthru
      _
    %p149 = scmp.lt.s32.totalorder %s10, 2
    // Predicated region
    $region25: #{tpu_custom_call.1} parent=5 // pred_check
      %p150 = pneg %p149
    $region26: #{tpu_custom_call.1} parent=5 // pred_check_branch
      %152 = sbr.rel (%p150) target = $region28
    $region27: #{tpu_custom_call.1} parent=5 // pred_region
      // Predicated region
      $region29: #{tpu_custom_call.1} parent=27 // pred_check
        %p153 = pneg %p30
      $region30: #{tpu_custom_call.1} parent=27 // pred_check_branch
        %155 = sbr.rel (%p153) target = $region32
      $region31: #{tpu_custom_call.1} parent=27 // pred_region
        %s156 = smul.u32 32, %s10
        %p157 = scmp.lt.s32.totalorder %s156, 63
        %s158 = scalar_select %p157, %s156, 63
        %s159 = smul.addr %s158, 8
        %s160 = scalar_lea.vmem %s0, %s159
        %s161 = smul.u32 32, %s10
      $region32: #{tpu_custom_call.1} parent=27 // pred_fallthru
        _
    $region28: #{tpu_custom_call.1} parent=5 // pred_fallthru
      _
    %p162 = scmp.le.s32.totalorder 1, %s10
    %p163 = scmp.lt.s32.totalorder %s10, 3
    %p164 = pnand %p162, %p163
    %p165 = pneg %p164
    // Predicated region
    $region33: #{tpu_custom_call.1} parent=5 // pred_check
      _
    $region34: #{tpu_custom_call.1} parent=5 // pred_check_branch
      %167 = sbr.rel (%p164) target = $region36
    $region35: #{tpu_custom_call.1} parent=5 // pred_region
      %s168 = ssub.s32 %s10, 1
      %s169 = smul.u32 32, %s15
      %p170 = scmp.lt.s32.totalorder %s169, 63
      %s171 = scalar_select %p170, %s169, 63
      %s172 = smul.addr %s171, 8
      %s173 = scalar_lea.vmem %s0, %s172
      %p174 = pneg %p36
      %p175 = pneg %p33
      %p176 = pneg %p57
      %p177 = pneg %p54
      %p178 = pneg %p78
      %p179 = pneg %p75
      %p180 = pneg %p99
      %p181 = pneg %p96
      %p182 = pneg %p125
      %p183 = pneg %p122
      %s184 = smul.u32 32, %s15
      %p185 = scmp.lt.s32.totalorder %s184, 63
      %s186 = scalar_select %p185, %s184, 63
      %s187 = smul.addr %s186, 8
      %s188 = scalar_lea.vmem %s4, %s187
      %s189 = smul.u32 32, %s15
      %p190 = scmp.lt.s32.totalorder %s189, 63
      %s191 = scalar_select %p190, %s189, 63
      %s192 = smul.addr %s191, 8
      %s193 = scalar_lea.vmem %s0, %s192
      %s194 = smul.u32 32, %s15
      %s195 = smul.u32 32, %s15
      %p196 = scmp.lt.s32.totalorder %s195, 63
      %s197 = scalar_select %p196, %s195, 63
      %s198 = smul.addr %s197, 8
      %s199 = scalar_lea.vmem %s4, %s198
      %s200 = smul.u32 32, %s15
      %v201 = vld [vmem:[%s193] sm:$0xff]
      %v202 = vld [vmem:[%s193 + $0x8] sm:$0xff]
      %v203 = vld [vmem:[%s193 + $0x10] sm:$0xff]
      %v204 = vld [vmem:[%s193 + $0x18] sm:$0xff]
      %v205 = vld [vmem:[%s193 + $0x20] sm:$0xff]
      %v206 = vld [vmem:[%s193 + $0x28] sm:$0xff]
      %v207 = vld [vmem:[%s193 + $0x30] sm:$0xff]
      %v208 = vld [vmem:[%s193 + $0x38] sm:$0xff]
      %v209 = vld [vmem:[%s193 + $0x40] sm:$0xff]
      %v210 = vld [vmem:[%s193 + $0x48] sm:$0xff]
      %v211 = vld [vmem:[%s193 + $0x50] sm:$0xff]
      %v212 = vld [vmem:[%s193 + $0x58] sm:$0xff]
      %v213 = vld [vmem:[%s193 + $0x60] sm:$0xff]
      %v214 = vld [vmem:[%s193 + $0x68] sm:$0xff]
      %v215 = vld [vmem:[%s193 + $0x70] sm:$0xff]
      %v216 = vld [vmem:[%s193 + $0x78] sm:$0xff]
      %v217 = vld [vmem:[%s193 + $0x80] sm:$0xff]
      %v218 = vld [vmem:[%s193 + $0x88] sm:$0xff]
      %v219 = vld [vmem:[%s193 + $0x90] sm:$0xff]
      %v220 = vld [vmem:[%s193 + $0x98] sm:$0xff]
      %v221 = vld [vmem:[%s193 + $0xa0] sm:$0xff]
      %v222 = vld [vmem:[%s193 + $0xa8] sm:$0xff]
      %v223 = vld [vmem:[%s193 + $0xb0] sm:$0xff]
      %v224 = vld [vmem:[%s193 + $0xb8] sm:$0xff]
      %v225 = vld [vmem:[%s193 + $0xc0] sm:$0xff]
      %v226 = vld [vmem:[%s193 + $0xc8] sm:$0xff]
      %v227 = vld [vmem:[%s193 + $0xd0] sm:$0xff]
      %v228 = vld [vmem:[%s193 + $0xd8] sm:$0xff]
      %v229 = vld [vmem:[%s193 + $0xe0] sm:$0xff]
      %v230 = vld [vmem:[%s193 + $0xe8] sm:$0xff]
      %v231 = vld [vmem:[%s193 + $0xf0] sm:$0xff]
      %v232 = vld [vmem:[%s193 + $0xf8] sm:$0xff]
      %v233 = vld [vmem:[%s1] sm:$0xff]
      %v234 = vld [vmem:[%s1 + $0x8] sm:$0xff]
      %v235 = vld [vmem:[%s1 + $0x10] sm:$0xff]
      %v236 = vld [vmem:[%s1 + $0x18] sm:$0x7]
      %vm237 = vcmask 220160
      %v239 = vsel %vm237, %v201, 0
      %v242 = vsel %vm237, %v202, 0
      %v245 = vsel %vm237, %v203, 0
      %v248 = vsel %vm237, %v204, 0
      %v251 = vsel %vm237, %v205, 0
      %v254 = vsel %vm237, %v206, 0
      %v257 = vsel %vm237, %v207, 0
      %v260 = vsel %vm237, %v208, 0
      %v263 = vsel %vm237, %v209, 0
      %v266 = vsel %vm237, %v210, 0
      %v269 = vsel %vm237, %v211, 0
      %v272 = vsel %vm237, %v212, 0
      %v275 = vsel %vm237, %v213, 0
      %v278 = vsel %vm237, %v214, 0
      %v281 = vsel %vm237, %v215, 0
      %v284 = vsel %vm237, %v216, 0
      %v287 = vsel %vm237, %v217, 0
      %v290 = vsel %vm237, %v218, 0
      %v293 = vsel %vm237, %v219, 0
      %v296 = vsel %vm237, %v220, 0
      %v299 = vsel %vm237, %v221, 0
      %v302 = vsel %vm237, %v222, 0
      %v305 = vsel %vm237, %v223, 0
      %v308 = vsel %vm237, %v224, 0
      %v311 = vsel %vm237, %v225, 0
      %v314 = vsel %vm237, %v226, 0
      %v317 = vsel %vm237, %v227, 0
      %v320 = vsel %vm237, %v228, 0
      %v323 = vsel %vm237, %v229, 0
      %v326 = vsel %vm237, %v230, 0
      %v329 = vsel %vm237, %v231, 0
      %v332 = vsel %vm237, %v232, 0
      %vm334 = vcmask 1042432
      %v336 = vsel %vm334, %v236, 0
      %338 = vmatprep.subr.mxu0 0.0
      %v339 = vand.u32 %v233, 4294901760
      %340 = vmatpush1.msra.mxu0 %v339
      %341 = vmatprep.subr.mxu0 0.0
      %v342 = vand.u32 %v234, 4294901760
      %343 = vmatpush1.msra.mxu0 %v342
      %344 = vmatprep.subr.mxu0 0.0
      %v345 = vand.u32 %v235, 4294901760
      %346 = vmatpush1.msra.mxu0 %v345
      %347 = vmatprep.subr.mxu0 0.0
      %v348 = vand.u32 %v336, 4294901760
      %349 = vmatpush1.msra.mxu0 %v348
      %350 = vmatprep.subr.mxu0 0.0
      %351 = vmatpush1.msra.mxu0 0.0
      %352 = vmatprep.subr.mxu0 0.0
      %353 = vmatpush1.msra.mxu0 0.0
      %354 = vmatprep.subr.mxu0 0.0
      %355 = vmatpush1.msra.mxu0 0.0
      %356 = vmatprep.subr.mxu0 0.0
      %357 = vmatpush1.msra.mxu0 0.0
      %358 = vmatprep.subr.mxu0 0.0
      %359 = vmatpush1.msra.mxu0 0.0
      %360 = vmatprep.subr.mxu0 0.0
      %361 = vmatpush1.msra.mxu0 0.0
      %362 = vmatprep.subr.mxu0 0.0
      %363 = vmatpush1.msra.mxu0 0.0
      %364 = vmatprep.subr.mxu0 0.0
      %365 = vmatpush1.msra.mxu0 0.0
      %366 = vmatprep.subr.mxu0 0.0
      %367 = vmatpush1.msra.mxu0 0.0
      %368 = vmatprep.subr.mxu0 0.0
      %369 = vmatpush1.msra.mxu0 0.0
      %370 = vmatprep.subr.mxu0 0.0
      %371 = vmatpush1.msra.mxu0 0.0
      %372 = vmatprep.subr.mxu0 0.0
      %373 = vmatpush1.msra.mxu0 0.0
      %374 = vmatprep.subr.mxu0 0.0
      %375 = vmatpush1.msra.mxu0 0.0
      %376 = vmatprep.subr.mxu0 0.0
      %377 = vmatpush1.msra.mxu0 0.0
      %378 = vmatprep.subr.mxu0 0.0
      %379 = vmatpush1.msra.mxu0 0.0
      %380 = vmatprep.subr.mxu0 0.0
      %381 = vmatpush1.msra.mxu0 0.0
      %382 = vmatprep.subr.mxu0 0.0
      %383 = vmatpush1.msra.mxu0 0.0
      %384 = vmatprep.subr.mxu0 0.0
      %385 = vmatpush1.msra.mxu0 0.0
      %386 = vmatprep.subr.mxu0 0.0
      %387 = vmatpush1.msra.mxu0 0.0
      %388 = vmatprep.subr.mxu0 0.0
      %389 = vmatpush1.msra.mxu0 0.0
      %390 = vmatprep.subr.mxu0 0.0
      %391 = vmatpush1.msra.mxu0 0.0
      %392 = vmatprep.subr.mxu0 0.0
      %393 = vmatpush1.msra.mxu0 0.0
      %394 = vmatprep.subr.mxu0 0.0
      %395 = vmatpush1.msra.mxu0 0.0
      %396 = vmatprep.subr.mxu0 0.0
      %397 = vmatpush1.msra.mxu0 0.0
      %398 = vmatprep.subr.mxu0 0.0
      %399 = vmatpush1.msra.mxu0 0.0
      %400 = vmatprep.subr.mxu0 0.0
      %401 = vmatpush1.msra.mxu0 0.0
      %402 = vmatprep.subr.mxu0 0.0
      %403 = vmatpush1.msra.mxu0 0.0
      %404 = vmatprep.subr.mxu0 0.0
      %405 = vmatpush1.msra.mxu0 0.0
      %406 = vmatprep.mubr.f32.mxu0 0.0
      %v407 = vand.u32 %v239, 4294901760
      %v408 = vsub.f32 %v239, %v407
      %v409 = vand.u32 %v408, 4294901760
      %v410 = vsub.f32 %v408, %v409
      %v411 = vand.u32 %v410, 4294901760
      %412 = vmatmul.mubr.f32.gmra.mrb[0].mxu0 %v411
      %v413 = vpop.f32.mrb[0].mxu0
      %v414 = vadd.f32 0.0, %v413
      %v415 = vpop.f32.mrb[0].mxu0
      %416 = vmatprep.mubr.f32.mxu0 0.0
      %v417 = vand.u32 %v242, 4294901760
      %v418 = vsub.f32 %v242, %v417
      %v419 = vand.u32 %v418, 4294901760
      %v420 = vsub.f32 %v418, %v419
      %v421 = vand.u32 %v420, 4294901760
      %422 = vmatmul.mubr.f32.gmra.mrb[0].mxu0 %v421
      %v423 = vpop.f32.mrb[0].mxu0
      %v424 = vadd.f32 0.0, %v423
      %v425 = vpop.f32.mrb[0].mxu0
      %426 = vmatprep.mubr.f32.mxu0 0.0
      %v427 = vand.u32 %v245, 4294901760
      %v428 = vsub.f32 %v245, %v427
      %v429 = vand.u32 %v428, 4294901760
      %v430 = vsub.f32 %v428, %v429
      %v431 = vand.u32 %v430, 4294901760
      %432 = vmatmul.mubr.f32.gmra.mrb[0].mxu0 %v431
      %v433 = vpop.f32.mrb[0].mxu0
      %v434 = vadd.f32 0.0, %v433
      %v435 = vpop.f32.mrb[0].mxu0
      %436 = vmatprep.mubr.f32.mxu0 0.0
      %v437 = vand.u32 %v248, 4294901760
      %v438 = vsub.f32 %v248, %v437
      %v439 = vand.u32 %v438, 4294901760
      %v440 = vsub.f32 %v438, %v439
      %v441 = vand.u32 %v440, 4294901760
      %442 = vmatmul.mubr.f32.gmra.mrb[0].mxu0 %v441
      %v443 = vpop.f32.mrb[0].mxu0
      %v444 = vadd.f32 0.0, %v443
      %v445 = vpop.f32.mrb[0].mxu0
      %446 = vmatprep.mubr.f32.mxu0 0.0
      %v447 = vand.u32 %v251, 4294901760
      %v448 = vsub.f32 %v251, %v447
      %v449 = vand.u32 %v448, 4294901760
      %v450 = vsub.f32 %v448, %v449
      %v451 = vand.u32 %v450, 4294901760
      %452 = vmatmul.mubr.f32.gmra.mrb[0].mxu0 %v451
      %v453 = vpop.f32.mrb[0].mxu0
      %v454 = vadd.f32 0.0, %v453
      %v455 = vpop.f32.mrb[0].mxu0
      %456 = vmatprep.mubr.f32.mxu0 0.0
      %v457 = vand.u32 %v254, 4294901760
      %v458 = vsub.f32 %v254, %v457
      %v459 = vand.u32 %v458, 4294901760
      %v460 = vsub.f32 %v458, %v459
      %v461 = vand.u32 %v460, 4294901760
      %462 = vmatmul.mubr.f32.gmra.mrb[0].mxu0 %v461
      %v463 = vpop.f32.mrb[0].mxu0
      %v464 = vadd.f32 0.0, %v463
      %v465 = vpop.f32.mrb[0].mxu0
      %466 = vmatprep.mubr.f32.mxu0 0.0
      %v467 = vand.u32 %v257, 4294901760
      %v468 = vsub.f32 %v257, %v467
      %v469 = vand.u32 %v468, 4294901760
      %v470 = vsub.f32 %v468, %v469
      %v471 = vand.u32 %v470, 4294901760
      %472 = vmatmul.mubr.f32.gmra.mrb[0].mxu0 %v471
      %v473 = vpop.f32.mrb[0].mxu0
      %v474 = vadd.f32 0.0, %v473
      %v475 = vpop.f32.mrb[0].mxu0
      %476 = vmatprep.mubr.f32.mxu0 0.0
      %v477 = vand.u32 %v260, 4294901760
      %v478 = vsub.f32 %v260, %v477
      %v479 = vand.u32 %v478, 4294901760
      %v480 = vsub.f32 %v478, %v479
      %v481 = vand.u32 %v480, 4294901760
      %482 = vmatmul.mubr.f32.gmra.mrb[0].mxu0 %v481
      %v483 = vpop.f32.mrb[0].mxu0
      %v484 = vadd.f32 0.0, %v483
      %v485 = vpop.f32.mrb[0].mxu0
      %486 = vmatprep.mubr.f32.mxu0 0.0
      %v487 = vand.u32 %v263, 4294901760
      %v488 = vsub.f32 %v263, %v487
      %v489 = vand.u32 %v488, 4294901760
      %v490 = vsub.f32 %v488, %v489
      %v491 = vand.u32 %v490, 4294901760
      %492 = vmatmul.mubr.f32.gmra.mrb[0].mxu0 %v491
      %v493 = vpop.f32.mrb[0].mxu0
      %v494 = vadd.f32 0.0, %v493
      %v495 = vpop.f32.mrb[0].mxu0
      %496 = vmatprep.mubr.f32.mxu0 0.0
      %v497 = vand.u32 %v266, 4294901760
      %v498 = vsub.f32 %v266, %v497
      %v499 = vand.u32 %v498, 4294901760
      %v500 = vsub.f32 %v498, %v499
      %v501 = vand.u32 %v500, 4294901760
      %502 = vmatmul.mubr.f32.gmra.mrb[0].mxu0 %v501
      %v503 = vpop.f32.mrb[0].mxu0
      %v504 = vadd.f32 0.0, %v503
      %v505 = vpop.f32.mrb[0].mxu0
      %506 = vmatprep.mubr.f32.mxu0 0.0
      %v507 = vand.u32 %v269, 4294901760
      %v508 = vsub.f32 %v269, %v507
      %v509 = vand.u32 %v508, 4294901760
      %v510 = vsub.f32 %v508, %v509
      %v511 = vand.u32 %v510, 4294901760
      %512 = vmatmul.mubr.f32.gmra.mrb[0].mxu0 %v511
      %v513 = vpop.f32.mrb[0].mxu0
      %v514 = vadd.f32 0.0, %v513
      %v515 = vpop.f32.mrb[0].mxu0
      %516 = vmatprep.mubr.f32.mxu0 0.0
      %v517 = vand.u32 %v272, 4294901760
      %v518 = vsub.f32 %v272, %v517
      %v519 = vand.u32 %v518, 4294901760
      %v520 = vsub.f32 %v518, %v519
      %v521 = vand.u32 %v520, 4294901760
      %522 = vmatmul.mubr.f32.gmra.mrb[0].mxu0 %v521
      %v523 = vpop.f32.mrb[0].mxu0
      %v524 = vadd.f32 0.0, %v523
      %v525 = vpop.f32.mrb[0].mxu0
      %526 = vmatprep.mubr.f32.mxu0 0.0
      %v527 = vand.u32 %v275, 4294901760
      %v528 = vsub.f32 %v275, %v527
      %v529 = vand.u32 %v528, 4294901760
      %v530 = vsub.f32 %v528, %v529
      %v531 = vand.u32 %v530, 4294901760
      %532 = vmatmul.mubr.f32.gmra.mrb[0].mxu0 %v531
      %v533 = vpop.f32.mrb[0].mxu0
      %v534 = vadd.f32 0.0, %v533
      %v535 = vpop.f32.mrb[0].mxu0
      %536 = vmatprep.mubr.f32.mxu0 0.0
      %v537 = vand.u32 %v278, 4294901760
      %v538 = vsub.f32 %v278, %v537
      %v539 = vand.u32 %v538, 4294901760
      %v540 = vsub.f32 %v538, %v539
      %v541 = vand.u32 %v540, 4294901760
      %542 = vmatmul.mubr.f32.gmra.mrb[0].mxu0 %v541
      %v543 = vpop.f32.mrb[0].mxu0
      %v544 = vadd.f32 0.0, %v543
      %v545 = vpop.f32.mrb[0].mxu0
      %546 = vmatprep.mubr.f32.mxu0 0.0
      %v547 = vand.u32 %v281, 4294901760
      %v548 = vsub.f32 %v281, %v547
      %v549 = vand.u32 %v548, 4294901760
      %v550 = vsub.f32 %v548, %v549
      %v551 = vand.u32 %v550, 4294901760
      %552 = vmatmul.mubr.f32.gmra.mrb[0].mxu0 %v551
      %v553 = vpop.f32.mrb[0].mxu0
      %v554 = vadd.f32 0.0, %v553
      %v555 = vpop.f32.mrb[0].mxu0
      %556 = vmatprep.mubr.f32.mxu0 0.0
      %v557 = vand.u32 %v284, 4294901760
      %v558 = vsub.f32 %v284, %v557
      %v559 = vand.u32 %v558, 4294901760
      %v560 = vsub.f32 %v558, %v559
      %v561 = vand.u32 %v560, 4294901760
      %562 = vmatmul.mubr.f32.gmra.mrb[0].mxu0 %v561
      %v563 = vpop.f32.mrb[0].mxu0
      %v564 = vadd.f32 0.0, %v563
      %v565 = vpop.f32.mrb[0].mxu0
      %566 = vmatprep.mubr.f32.mxu0 0.0
      %v567 = vand.u32 %v287, 4294901760
      %v568 = vsub.f32 %v287, %v567
      %v569 = vand.u32 %v568, 4294901760
      %v570 = vsub.f32 %v568, %v569
      %v571 = vand.u32 %v570, 4294901760
      %572 = vmatmul.mubr.f32.gmra.mrb[0].mxu0 %v571
      %v573 = vpop.f32.mrb[0].mxu0
      %v574 = vadd.f32 0.0, %v573
      %v575 = vpop.f32.mrb[0].mxu0
      %576 = vmatprep.mubr.f32.mxu0 0.0
      %v577 = vand.u32 %v290, 4294901760
      %v578 = vsub.f32 %v290, %v577
      %v579 = vand.u32 %v578, 4294901760
      %v580 = vsub.f32 %v578, %v579
      %v581 = vand.u32 %v580, 4294901760
      %582 = vmatmul.mubr.f32.gmra.mrb[0].mxu0 %v581
      %v583 = vpop.f32.mrb[0].mxu0
      %v584 = vadd.f32 0.0, %v583
      %v585 = vpop.f32.mrb[0].mxu0
      %586 = vmatprep.mubr.f32.mxu0 0.0
      %v587 = vand.u32 %v293, 4294901760
      %v588 = vsub.f32 %v293, %v587
      %v589 = vand.u32 %v588, 4294901760
      %v590 = vsub.f32 %v588, %v589
      %v591 = vand.u32 %v590, 4294901760
      %592 = vmatmul.mubr.f32.gmra.mrb[0].mxu0 %v591
      %v593 = vpop.f32.mrb[0].mxu0
      %v594 = vadd.f32 0.0, %v593
      %v595 = vpop.f32.mrb[0].mxu0
      %596 = vmatprep.mubr.f32.mxu0 0.0
      %v597 = vand.u32 %v296, 4294901760
      %v598 = vsub.f32 %v296, %v597
      %v599 = vand.u32 %v598, 4294901760
      %v600 = vsub.f32 %v598, %v599
      %v601 = vand.u32 %v600, 4294901760
      %602 = vmatmul.mubr.f32.gmra.mrb[0].mxu0 %v601
      %v603 = vpop.f32.mrb[0].mxu0
      %v604 = vadd.f32 0.0, %v603
      %v605 = vpop.f32.mrb[0].mxu0
      %606 = vmatprep.mubr.f32.mxu0 0.0
      %v607 = vand.u32 %v299, 4294901760
      %v608 = vsub.f32 %v299, %v607
      %v609 = vand.u32 %v608, 4294901760
      %v610 = vsub.f32 %v608, %v609
      %v611 = vand.u32 %v610, 4294901760
      %612 = vmatmul.mubr.f32.gmra.mrb[0].mxu0 %v611
      %v613 = vpop.f32.mrb[0].mxu0
      %v614 = vadd.f32 0.0, %v613
      %v615 = vpop.f32.mrb[0].mxu0
      %616 = vmatprep.mubr.f32.mxu0 0.0
      %v617 = vand.u32 %v302, 4294901760
      %v618 = vsub.f32 %v302, %v617
      %v619 = vand.u32 %v618, 4294901760
      %v620 = vsub.f32 %v618, %v619
      %v621 = vand.u32 %v620, 4294901760
      %622 = vmatmul.mubr.f32.gmra.mrb[0].mxu0 %v621
      %v623 = vpop.f32.mrb[0].mxu0
      %v624 = vadd.f32 0.0, %v623
      %v625 = vpop.f32.mrb[0].mxu0
      %626 = vmatprep.mubr.f32.mxu0 0.0
      %v627 = vand.u32 %v305, 4294901760
      %v628 = vsub.f32 %v305, %v627
      %v629 = vand.u32 %v628, 4294901760
      %v630 = vsub.f32 %v628, %v629
      %v631 = vand.u32 %v630, 4294901760
      %632 = vmatmul.mubr.f32.gmra.mrb[0].mxu0 %v631
      %v633 = vpop.f32.mrb[0].mxu0
      %v634 = vadd.f32 0.0, %v633
      %v635 = vpop.f32.mrb[0].mxu0
      %636 = vmatprep.mubr.f32.mxu0 0.0
      %v637 = vand.u32 %v308, 4294901760
      %v638 = vsub.f32 %v308, %v637
      %v639 = vand.u32 %v638, 4294901760
      %v640 = vsub.f32 %v638, %v639
      %v641 = vand.u32 %v640, 4294901760
      %642 = vmatmul.mubr.f32.gmra.mrb[0].mxu0 %v641
      %v643 = vpop.f32.mrb[0].mxu0
      %v644 = vadd.f32 0.0, %v643
      %v645 = vpop.f32.mrb[0].mxu0
      %646 = vmatprep.mubr.f32.mxu0 0.0
      %v647 = vand.u32 %v311, 4294901760
      %v648 = vsub.f32 %v311, %v647
      %v649 = vand.u32 %v648, 4294901760
      %v650 = vsub.f32 %v648, %v649
      %v651 = vand.u32 %v650, 4294901760
      %652 = vmatmul.mubr.f32.gmra.mrb[0].mxu0 %v651
      %v653 = vpop.f32.mrb[0].mxu0
      %v654 = vadd.f32 0.0, %v653
      %v655 = vpop.f32.mrb[0].mxu0
      %656 = vmatprep.mubr.f32.mxu0 0.0
      %v657 = vand.u32 %v314, 4294901760
      %v658 = vsub.f32 %v314, %v657
      %v659 = vand.u32 %v658, 4294901760
      %v660 = vsub.f32 %v658, %v659
      %v661 = vand.u32 %v660, 4294901760
      %662 = vmatmul.mubr.f32.gmra.mrb[0].mxu0 %v661
      %v663 = vpop.f32.mrb[0].mxu0
      %v664 = vadd.f32 0.0, %v663
      %v665 = vpop.f32.mrb[0].mxu0
      %666 = vmatprep.mubr.f32.mxu0 0.0
      %v667 = vand.u32 %v317, 4294901760
      %v668 = vsub.f32 %v317, %v667
      %v669 = vand.u32 %v668, 4294901760
      %v670 = vsub.f32 %v668, %v669
      %v671 = vand.u32 %v670, 4294901760
      %672 = vmatmul.mubr.f32.gmra.mrb[0].mxu0 %v671
      %v673 = vpop.f32.mrb[0].mxu0
      %v674 = vadd.f32 0.0, %v673
      %v675 = vpop.f32.mrb[0].mxu0
      %676 = vmatprep.mubr.f32.mxu0 0.0
      %v677 = vand.u32 %v320, 4294901760
      %v678 = vsub.f32 %v320, %v677
      %v679 = vand.u32 %v678, 4294901760
      %v680 = vsub.f32 %v678, %v679
      %v681 = vand.u32 %v680, 4294901760
      %682 = vmatmul.mubr.f32.gmra.mrb[0].mxu0 %v681
      %v683 = vpop.f32.mrb[0].mxu0
      %v684 = vadd.f32 0.0, %v683
      %v685 = vpop.f32.mrb[0].mxu0
      %686 = vmatprep.mubr.f32.mxu0 0.0
      %v687 = vand.u32 %v323, 4294901760
      %v688 = vsub.f32 %v323, %v687
      %v689 = vand.u32 %v688, 4294901760
      %v690 = vsub.f32 %v688, %v689
      %v691 = vand.u32 %v690, 4294901760
      %692 = vmatmul.mubr.f32.gmra.mrb[0].mxu0 %v691
      %v693 = vpop.f32.mrb[0].mxu0
      %v694 = vadd.f32 0.0, %v693
      %v695 = vpop.f32.mrb[0].mxu0
      %696 = vmatprep.mubr.f32.mxu0 0.0
      %v697 = vand.u32 %v326, 4294901760
      %v698 = vsub.f32 %v326, %v697
      %v699 = vand.u32 %v698, 4294901760
      %v700 = vsub.f32 %v698, %v699
      %v701 = vand.u32 %v700, 4294901760
      %702 = vmatmul.mubr.f32.gmra.mrb[0].mxu0 %v701
      %v703 = vpop.f32.mrb[0].mxu0
      %v704 = vadd.f32 0.0, %v703
      %v705 = vpop.f32.mrb[0].mxu0
      %706 = vmatprep.mubr.f32.mxu0 0.0
      %v707 = vand.u32 %v329, 4294901760
      %v708 = vsub.f32 %v329, %v707
      %v709 = vand.u32 %v708, 4294901760
      %v710 = vsub.f32 %v708, %v709
      %v711 = vand.u32 %v710, 4294901760
      %712 = vmatmul.mubr.f32.gmra.mrb[0].mxu0 %v711
      %v713 = vpop.f32.mrb[0].mxu0
      %v714 = vadd.f32 0.0, %v713
      %v715 = vpop.f32.mrb[0].mxu0
      %716 = vmatprep.mubr.f32.mxu0 0.0
      %v717 = vand.u32 %v332, 4294901760
      %v718 = vsub.f32 %v332, %v717
      %v719 = vand.u32 %v718, 4294901760
      %v720 = vsub.f32 %v718, %v719
      %v721 = vand.u32 %v720, 4294901760
      %722 = vmatmul.mubr.f32.gmra.mrb[0].mxu0 %v721
      %v723 = vpop.f32.mrb[0].mxu0
      %v724 = vadd.f32 0.0, %v723
      %v725 = vpop.f32.mrb[0].mxu0
      %726 = vdwg.mxu0
      %727 = vmatprep.subr.mxu0 0.0
      %v728 = vand.u32 %v233, 4294901760
      %v729 = vsub.f32 %v233, %v728
      %v730 = vand.u32 %v729, 4294901760
      %v731 = vsub.f32 %v729, %v730
      %v732 = vand.u32 %v731, 4294901760
      %733 = vmatpush1.msra.mxu0 %v732
      %734 = vmatprep.subr.mxu0 0.0
      %v735 = vand.u32 %v234, 4294901760
      %v736 = vsub.f32 %v234, %v735
      %v737 = vand.u32 %v736, 4294901760
      %v738 = vsub.f32 %v736, %v737
      %v739 = vand.u32 %v738, 4294901760
      %740 = vmatpush1.msra.mxu0 %v739
      %741 = vmatprep.subr.mxu0 0.0
      %v742 = vand.u32 %v235, 4294901760
      %v743 = vsub.f32 %v235, %v742
      %v744 = vand.u32 %v743, 4294901760
      %v745 = vsub.f32 %v743, %v744
      %v746 = vand.u32 %v745, 4294901760
      %747 = vmatpush1.msra.mxu0 %v746
      %748 = vmatprep.subr.mxu0 0.0
      %v749 = vand.u32 %v336, 4294901760
      %v750 = vsub.f32 %v336, %v749
      %v751 = vand.u32 %v750, 4294901760
      %v752 = vsub.f32 %v750, %v751
      %v753 = vand.u32 %v752, 4294901760
      %754 = vmatpush1.msra.mxu0 %v753
      %755 = vmatprep.subr.mxu0 0.0
      %756 = vmatpush1.msra.mxu0 0.0
      %757 = vmatprep.subr.mxu0 0.0
      %758 = vmatpush1.msra.mxu0 0.0
      %759 = vmatprep.subr.mxu0 0.0
      %760 = vmatpush1.msra.mxu0 0.0
      %761 = vmatprep.subr.mxu0 0.0
      %762 = vmatpush1.msra.mxu0 0.0
      %763 = vmatprep.subr.mxu0 0.0
      %764 = vmatpush1.msra.mxu0 0.0
      %765 = vmatprep.subr.mxu0 0.0
      %766 = vmatpush1.msra.mxu0 0.0
      %767 = vmatprep.subr.mxu0 0.0
      %768 = vmatpush1.msra.mxu0 0.0
      %769 = vmatprep.subr.mxu0 0.0
      %770 = vmatpush1.msra.mxu0 0.0
      %771 = vmatprep.subr.mxu0 0.0
      %772 = vmatpush1.msra.mxu0 0.0
      %773 = vmatprep.subr.mxu0 0.0
      %774 = vmatpush1.msra.mxu0 0.0
      %775 = vmatprep.subr.mxu0 0.0
      %776 = vmatpush1.msra.mxu0 0.0
      %777 = vmatprep.subr.mxu0 0.0
      %778 = vmatpush1.msra.mxu0 0.0
      %779 = vmatprep.subr.mxu0 0.0
      %780 = vmatpush1.msra.mxu0 0.0
      %781 = vmatprep.subr.mxu0 0.0
      %782 = vmatpush1.msra.mxu0 0.0
      %783 = vmatprep.subr.mxu0 0.0
      %784 = vmatpush1.msra.mxu0 0.0
      %785 = vmatprep.subr.mxu0 0.0
      %786 = vmatpush1.msra.mxu0 0.0
      %787 = vmatprep.subr.mxu0 0.0
      %788 = vmatpush1.msra.mxu0 0.0
      %789 = vmatprep.subr.mxu0 0.0
      %790 = vmatpush1.msra.mxu0 0.0
      %791 = vmatprep.subr.mxu0 0.0
      %792 = vmatpush1.msra.mxu0 0.0
      %793 = vmatprep.subr.mxu0 0.0
      %794 = vmatpush1.msra.mxu0 0.0
      %795 = vmatprep.subr.mxu0 0.0
      %796 = vmatpush1.msra.mxu0 0.0
      %797 = vmatprep.subr.mxu0 0.0
      %798 = vmatpush1.msra.mxu0 0.0
      %799 = vmatprep.subr.mxu0 0.0
      %800 = vmatpush1.msra.mxu0 0.0
      %801 = vmatprep.subr.mxu0 0.0
      %802 = vmatpush1.msra.mxu0 0.0
      %803 = vmatprep.subr.mxu0 0.0
      %804 = vmatpush1.msra.mxu0 0.0
      %805 = vmatprep.subr.mxu0 0.0
      %806 = vmatpush1.msra.mxu0 0.0
      %807 = vmatprep.subr.mxu0 0.0
      %808 = vmatpush1.msra.mxu0 0.0
      %809 = vmatprep.subr.mxu0 0.0
      %810 = vmatpush1.msra.mxu0 0.0
      %811 = vmatprep.mubr.f32.mxu0 0.0
      %v812 = vand.u32 %v239, 4294901760
      %813 = vmatmul.mubr.f32.gmra.mrb[0].mxu0 %v812
      %v814 = vpop.f32.mrb[0].mxu0
      %v815 = vadd.f32 %v414, %v814
      %v816 = vpop.f32.mrb[0].mxu0
      %817 = vmatprep.mubr.f32.mxu0 0.0
      %v818 = vand.u32 %v242, 4294901760
      %819 = vmatmul.mubr.f32.gmra.mrb[0].mxu0 %v818
      %v820 = vpop.f32.mrb[0].mxu0
      %v821 = vadd.f32 %v424, %v820
      %v822 = vpop.f32.mrb[0].mxu0
      %823 = vmatprep.mubr.f32.mxu0 0.0
      %v824 = vand.u32 %v245, 4294901760
      %825 = vmatmul.mubr.f32.gmra.mrb[0].mxu0 %v824
      %v826 = vpop.f32.mrb[0].mxu0
      %v827 = vadd.f32 %v434, %v826
      %v828 = vpop.f32.mrb[0].mxu0
      %829 = vmatprep.mubr.f32.mxu0 0.0
      %v830 = vand.u32 %v248, 4294901760
      %831 = vmatmul.mubr.f32.gmra.mrb[0].mxu0 %v830
      %v832 = vpop.f32.mrb[0].mxu0
      %v833 = vadd.f32 %v444, %v832
      %v834 = vpop.f32.mrb[0].mxu0
      %835 = vmatprep.mubr.f32.mxu0 0.0
      %v836 = vand.u32 %v251, 4294901760
      %837 = vmatmul.mubr.f32.gmra.mrb[0].mxu0 %v836
      %v838 = vpop.f32.mrb[0].mxu0
      %v839 = vadd.f32 %v454, %v838
      %v840 = vpop.f32.mrb[0].mxu0
      %841 = vmatprep.mubr.f32.mxu0 0.0
      %v842 = vand.u32 %v254, 4294901760
      %843 = vmatmul.mubr.f32.gmra.mrb[0].mxu0 %v842
      %v844 = vpop.f32.mrb[0].mxu0
      %v845 = vadd.f32 %v464, %v844
      %v846 = vpop.f32.mrb[0].mxu0
      %847 = vmatprep.mubr.f32.mxu0 0.0
      %v848 = vand.u32 %v257, 4294901760
      %849 = vmatmul.mubr.f32.gmra.mrb[0].mxu0 %v848
      %v850 = vpop.f32.mrb[0].mxu0
      %v851 = vadd.f32 %v474, %v850
      %v852 = vpop.f32.mrb[0].mxu0
      %853 = vmatprep.mubr.f32.mxu0 0.0
      %v854 = vand.u32 %v260, 4294901760
      %855 = vmatmul.mubr.f32.gmra.mrb[0].mxu0 %v854
      %v856 = vpop.f32.mrb[0].mxu0
      %v857 = vadd.f32 %v484, %v856
      %v858 = vpop.f32.mrb[0].mxu0
      %859 = vmatprep.mubr.f32.mxu0 0.0
      %v860 = vand.u32 %v263, 4294901760
      %861 = vmatmul.mubr.f32.gmra.mrb[0].mxu0 %v860
      %v862 = vpop.f32.mrb[0].mxu0
      %v863 = vadd.f32 %v494, %v862
      %v864 = vpop.f32.mrb[0].mxu0
      %865 = vmatprep.mubr.f32.mxu0 0.0
      %v866 = vand.u32 %v266, 4294901760
      %867 = vmatmul.mubr.f32.gmra.mrb[0].mxu0 %v866
      %v868 = vpop.f32.mrb[0].mxu0
      %v869 = vadd.f32 %v504, %v868
      %v870 = vpop.f32.mrb[0].mxu0
      %871 = vmatprep.mubr.f32.mxu0 0.0
      %v872 = vand.u32 %v269, 4294901760
      %873 = vmatmul.mubr.f32.gmra.mrb[0].mxu0 %v872
      %v874 = vpop.f32.mrb[0].mxu0
      %v875 = vadd.f32 %v514, %v874
      %v876 = vpop.f32.mrb[0].mxu0
      %877 = vmatprep.mubr.f32.mxu0 0.0
      %v878 = vand.u32 %v272, 4294901760
      %879 = vmatmul.mubr.f32.gmra.mrb[0].mxu0 %v878
      %v880 = vpop.f32.mrb[0].mxu0
      %v881 = vadd.f32 %v524, %v880
      %v882 = vpop.f32.mrb[0].mxu0
      %883 = vmatprep.mubr.f32.mxu0 0.0
      %v884 = vand.u32 %v275, 4294901760
      %885 = vmatmul.mubr.f32.gmra.mrb[0].mxu0 %v884
      %v886 = vpop.f32.mrb[0].mxu0
      %v887 = vadd.f32 %v534, %v886
      %v888 = vpop.f32.mrb[0].mxu0
      %889 = vmatprep.mubr.f32.mxu0 0.0
      %v890 = vand.u32 %v278, 4294901760
      %891 = vmatmul.mubr.f32.gmra.mrb[0].mxu0 %v890
      %v892 = vpop.f32.mrb[0].mxu0
      %v893 = vadd.f32 %v544, %v892
      %v894 = vpop.f32.mrb[0].mxu0
      %895 = vmatprep.mubr.f32.mxu0 0.0
      %v896 = vand.u32 %v281, 4294901760
      %897 = vmatmul.mubr.f32.gmra.mrb[0].mxu0 %v896
      %v898 = vpop.f32.mrb[0].mxu0
      %v899 = vadd.f32 %v554, %v898
      %v900 = vpop.f32.mrb[0].mxu0
      %901 = vmatprep.mubr.f32.mxu0 0.0
      %v902 = vand.u32 %v284, 4294901760
      %903 = vmatmul.mubr.f32.gmra.mrb[0].mxu0 %v902
      %v904 = vpop.f32.mrb[0].mxu0
      %v905 = vadd.f32 %v564, %v904
      %v906 = vpop.f32.mrb[0].mxu0
      %907 = vmatprep.mubr.f32.mxu0 0.0
      %v908 = vand.u32 %v287, 4294901760
      %909 = vmatmul.mubr.f32.gmra.mrb[0].mxu0 %v908
      %v910 = vpop.f32.mrb[0].mxu0
      %v911 = vadd.f32 %v574, %v910
      %v912 = vpop.f32.mrb[0].mxu0
      %913 = vmatprep.mubr.f32.mxu0 0.0
      %v914 = vand.u32 %v290, 4294901760
      %915 = vmatmul.mubr.f32.gmra.mrb[0].mxu0 %v914
      %v916 = vpop.f32.mrb[0].mxu0
      %v917 = vadd.f32 %v584, %v916
      %v918 = vpop.f32.mrb[0].mxu0
      %919 = vmatprep.mubr.f32.mxu0 0.0
      %v920 = vand.u32 %v293, 4294901760
      %921 = vmatmul.mubr.f32.gmra.mrb[0].mxu0 %v920
      %v922 = vpop.f32.mrb[0].mxu0
      %v923 = vadd.f32 %v594, %v922
      %v924 = vpop.f32.mrb[0].mxu0
      %925 = vmatprep.mubr.f32.mxu0 0.0
      %v926 = vand.u32 %v296, 4294901760
      %927 = vmatmul.mubr.f32.gmra.mrb[0].mxu0 %v926
      %v928 = vpop.f32.mrb[0].mxu0
      %v929 = vadd.f32 %v604, %v928
      %v930 = vpop.f32.mrb[0].mxu0
      %931 = vmatprep.mubr.f32.mxu0 0.0
      %v932 = vand.u32 %v299, 4294901760
      %933 = vmatmul.mubr.f32.gmra.mrb[0].mxu0 %v932
      %v934 = vpop.f32.mrb[0].mxu0
      %v935 = vadd.f32 %v614, %v934
      %v936 = vpop.f32.mrb[0].mxu0
      %937 = vmatprep.mubr.f32.mxu0 0.0
      %v938 = vand.u32 %v302, 4294901760
      %939 = vmatmul.mubr.f32.gmra.mrb[0].mxu0 %v938
      %v940 = vpop.f32.mrb[0].mxu0
      %v941 = vadd.f32 %v624, %v940
      %v942 = vpop.f32.mrb[0].mxu0
      %943 = vmatprep.mubr.f32.mxu0 0.0
      %v944 = vand.u32 %v305, 4294901760
      %945 = vmatmul.mubr.f32.gmra.mrb[0].mxu0 %v944
      %v946 = vpop.f32.mrb[0].mxu0
      %v947 = vadd.f32 %v634, %v946
      %v948 = vpop.f32.mrb[0].mxu0
      %949 = vmatprep.mubr.f32.mxu0 0.0
      %v950 = vand.u32 %v308, 4294901760
      %951 = vmatmul.mubr.f32.gmra.mrb[0].mxu0 %v950
      %v952 = vpop.f32.mrb[0].mxu0
      %v953 = vadd.f32 %v644, %v952
      %v954 = vpop.f32.mrb[0].mxu0
      %955 = vmatprep.mubr.f32.mxu0 0.0
      %v956 = vand.u32 %v311, 4294901760
      %957 = vmatmul.mubr.f32.gmra.mrb[0].mxu0 %v956
      %v958 = vpop.f32.mrb[0].mxu0
      %v959 = vadd.f32 %v654, %v958
      %v960 = vpop.f32.mrb[0].mxu0
      %961 = vmatprep.mubr.f32.mxu0 0.0
      %v962 = vand.u32 %v314, 4294901760
      %963 = vmatmul.mubr.f32.gmra.mrb[0].mxu0 %v962
      %v964 = vpop.f32.mrb[0].mxu0
      %v965 = vadd.f32 %v664, %v964
      %v966 = vpop.f32.mrb[0].mxu0
      %967 = vmatprep.mubr.f32.mxu0 0.0
      %v968 = vand.u32 %v317, 4294901760
      %969 = vmatmul.mubr.f32.gmra.mrb[0].mxu0 %v968
      %v970 = vpop.f32.mrb[0].mxu0
      %v971 = vadd.f32 %v674, %v970
      %v972 = vpop.f32.mrb[0].mxu0
      %973 = vmatprep.mubr.f32.mxu0 0.0
      %v974 = vand.u32 %v320, 4294901760
      %975 = vmatmul.mubr.f32.gmra.mrb[0].mxu0 %v974
      %v976 = vpop.f32.mrb[0].mxu0
      %v977 = vadd.f32 %v684, %v976
      %v978 = vpop.f32.mrb[0].mxu0
      %979 = vmatprep.mubr.f32.mxu0 0.0
      %v980 = vand.u32 %v323, 4294901760
      %981 = vmatmul.mubr.f32.gmra.mrb[0].mxu0 %v980
      %v982 = vpop.f32.mrb[0].mxu0
      %v983 = vadd.f32 %v694, %v982
      %v984 = vpop.f32.mrb[0].mxu0
      %985 = vmatprep.mubr.f32.mxu0 0.0
      %v986 = vand.u32 %v326, 4294901760
      %987 = vmatmul.mubr.f32.gmra.mrb[0].mxu0 %v986
      %v988 = vpop.f32.mrb[0].mxu0
      %v989 = vadd.f32 %v704, %v988
      %v990 = vpop.f32.mrb[0].mxu0
      %991 = vmatprep.mubr.f32.mxu0 0.0
      %v992 = vand.u32 %v329, 4294901760
      %993 = vmatmul.mubr.f32.gmra.mrb[0].mxu0 %v992
      %v994 = vpop.f32.mrb[0].mxu0
      %v995 = vadd.f32 %v714, %v994
      %v996 = vpop.f32.mrb[0].mxu0
      %997 = vmatprep.mubr.f32.mxu0 0.0
      %v998 = vand.u32 %v332, 4294901760
      %999 = vmatmul.mubr.f32.gmra.mrb[0].mxu0 %v998
      %v1000 = vpop.f32.mrb[0].mxu0
      %v1001 = vadd.f32 %v724, %v1000
      %v1002 = vpop.f32.mrb[0].mxu0
      %1003 = vdwg.mxu0
      %1004 = vmatprep.subr.mxu0 0.0
      %v1005 = vand.u32 %v233, 4294901760
      %v1006 = vsub.f32 %v233, %v1005
      %1007 = vmatpush1.msra.mxu0 %v1006
      %1008 = vmatprep.subr.mxu0 0.0
      %v1009 = vand.u32 %v234, 4294901760
      %v1010 = vsub.f32 %v234, %v1009
      %1011 = vmatpush1.msra.mxu0 %v1010
      %1012 = vmatprep.subr.mxu0 0.0
      %v1013 = vand.u32 %v235, 4294901760
      %v1014 = vsub.f32 %v235, %v1013
      %1015 = vmatpush1.msra.mxu0 %v1014
      %1016 = vmatprep.subr.mxu0 0.0
      %v1017 = vand.u32 %v336, 4294901760
      %v1018 = vsub.f32 %v336, %v1017
      %1019 = vmatpush1.msra.mxu0 %v1018
      %1020 = vmatprep.subr.mxu0 0.0
      %1021 = vmatpush1.msra.mxu0 0.0
      %1022 = vmatprep.subr.mxu0 0.0
      %1023 = vmatpush1.msra.mxu0 0.0
      %1024 = vmatprep.subr.mxu0 0.0
      %1025 = vmatpush1.msra.mxu0 0.0
      %1026 = vmatprep.subr.mxu0 0.0
      %1027 = vmatpush1.msra.mxu0 0.0
      %1028 = vmatprep.subr.mxu0 0.0
      %1029 = vmatpush1.msra.mxu0 0.0
      %1030 = vmatprep.subr.mxu0 0.0
      %1031 = vmatpush1.msra.mxu0 0.0
      %1032 = vmatprep.subr.mxu0 0.0
      %1033 = vmatpush1.msra.mxu0 0.0
      %1034 = vmatprep.subr.mxu0 0.0
      %1035 = vmatpush1.msra.mxu0 0.0
      %1036 = vmatprep.subr.mxu0 0.0
      %1037 = vmatpush1.msra.mxu0 0.0
      %1038 = vmatprep.subr.mxu0 0.0
      %1039 = vmatpush1.msra.mxu0 0.0
      %1040 = vmatprep.subr.mxu0 0.0
      %1041 = vmatpush1.msra.mxu0 0.0
      %1042 = vmatprep.subr.mxu0 0.0
      %1043 = vmatpush1.msra.mxu0 0.0
      %1044 = vmatprep.subr.mxu0 0.0
      %1045 = vmatpush1.msra.mxu0 0.0
      %1046 = vmatprep.subr.mxu0 0.0
      %1047 = vmatpush1.msra.mxu0 0.0
      %1048 = vmatprep.subr.mxu0 0.0
      %1049 = vmatpush1.msra.mxu0 0.0
      %1050 = vmatprep.subr.mxu0 0.0
      %1051 = vmatpush1.msra.mxu0 0.0
      %1052 = vmatprep.subr.mxu0 0.0
      %1053 = vmatpush1.msra.mxu0 0.0
      %1054 = vmatprep.subr.mxu0 0.0
      %1055 = vmatpush1.msra.mxu0 0.0
      %1056 = vmatprep.subr.mxu0 0.0
      %1057 = vmatpush1.msra.mxu0 0.0
      %1058 = vmatprep.subr.mxu0 0.0
      %1059 = vmatpush1.msra.mxu0 0.0
      %1060 = vmatprep.subr.mxu0 0.0
      %1061 = vmatpush1.msra.mxu0 0.0
      %1062 = vmatprep.subr.mxu0 0.0
      %1063 = vmatpush1.msra.mxu0 0.0
      %1064 = vmatprep.subr.mxu0 0.0
      %1065 = vmatpush1.msra.mxu0 0.0
      %1066 = vmatprep.subr.mxu0 0.0
      %1067 = vmatpush1.msra.mxu0 0.0
      %1068 = vmatprep.subr.mxu0 0.0
      %1069 = vmatpush1.msra.mxu0 0.0
      %1070 = vmatprep.subr.mxu0 0.0
      %1071 = vmatpush1.msra.mxu0 0.0
      %1072 = vmatprep.subr.mxu0 0.0
      %1073 = vmatpush1.msra.mxu0 0.0
      %1074 = vmatprep.subr.mxu0 0.0
      %1075 = vmatpush1.msra.mxu0 0.0
      %1076 = vmatprep.mubr.f32.mxu0 0.0
      %v1077 = vand.u32 %v239, 4294901760
      %v1078 = vsub.f32 %v239, %v1077
      %1079 = vmatmul.mubr.f32.gmra.mrb[0].mxu0 %v1078
      %v1080 = vpop.f32.mrb[0].mxu0
      %v1081 = vadd.f32 %v815, %v1080
      %v1082 = vpop.f32.mrb[0].mxu0
      %1083 = vmatprep.mubr.f32.mxu0 0.0
      %v1084 = vand.u32 %v242, 4294901760
      %v1085 = vsub.f32 %v242, %v1084
      %1086 = vmatmul.mubr.f32.gmra.mrb[0].mxu0 %v1085
      %v1087 = vpop.f32.mrb[0].mxu0
      %v1088 = vadd.f32 %v821, %v1087
      %v1089 = vpop.f32.mrb[0].mxu0
      %1090 = vmatprep.mubr.f32.mxu0 0.0
      %v1091 = vand.u32 %v245, 4294901760
      %v1092 = vsub.f32 %v245, %v1091
      %1093 = vmatmul.mubr.f32.gmra.mrb[0].mxu0 %v1092
      %v1094 = vpop.f32.mrb[0].mxu0
      %v1095 = vadd.f32 %v827, %v1094
      %v1096 = vpop.f32.mrb[0].mxu0
      %1097 = vmatprep.mubr.f32.mxu0 0.0
      %v1098 = vand.u32 %v248, 4294901760
      %v1099 = vsub.f32 %v248, %v1098
      %1100 = vmatmul.mubr.f32.gmra.mrb[0].mxu0 %v1099
      %v1101 = vpop.f32.mrb[0].mxu0
      %v1102 = vadd.f32 %v833, %v1101
      %v1103 = vpop.f32.mrb[0].mxu0
      %1104 = vmatprep.mubr.f32.mxu0 0.0
      %v1105 = vand.u32 %v251, 4294901760
      %v1106 = vsub.f32 %v251, %v1105
      %1107 = vmatmul.mubr.f32.gmra.mrb[0].mxu0 %v1106
      %v1108 = vpop.f32.mrb[0].mxu0
      %v1109 = vadd.f32 %v839, %v1108
      %v1110 = vpop.f32.mrb[0].mxu0
      %1111 = vmatprep.mubr.f32.mxu0 0.0
      %v1112 = vand.u32 %v254, 4294901760
      %v1113 = vsub.f32 %v254, %v1112
      %1114 = vmatmul.mubr.f32.gmra.mrb[0].mxu0 %v1113
      %v1115 = vpop.f32.mrb[0].mxu0
      %v1116 = vadd.f32 %v845, %v1115
      %v1117 = vpop.f32.mrb[0].mxu0
      %1118 = vmatprep.mubr.f32.mxu0 0.0
      %v1119 = vand.u32 %v257, 4294901760
      %v1120 = vsub.f32 %v257, %v1119
      %1121 = vmatmul.mubr.f32.gmra.mrb[0].mxu0 %v1120
      %v1122 = vpop.f32.mrb[0].mxu0
      %v1123 = vadd.f32 %v851, %v1122
      %v1124 = vpop.f32.mrb[0].mxu0
      %1125 = vmatprep.mubr.f32.mxu0 0.0
      %v1126 = vand.u32 %v260, 4294901760
      %v1127 = vsub.f32 %v260, %v1126
      %1128 = vmatmul.mubr.f32.gmra.mrb[0].mxu0 %v1127
      %v1129 = vpop.f32.mrb[0].mxu0
      %v1130 = vadd.f32 %v857, %v1129
      %v1131 = vpop.f32.mrb[0].mxu0
      %1132 = vmatprep.mubr.f32.mxu0 0.0
      %v1133 = vand.u32 %v263, 4294901760
      %v1134 = vsub.f32 %v263, %v1133
      %1135 = vmatmul.mubr.f32.gmra.mrb[0].mxu0 %v1134
      %v1136 = vpop.f32.mrb[0].mxu0
      %v1137 = vadd.f32 %v863, %v1136
      %v1138 = vpop.f32.mrb[0].mxu0
      %1139 = vmatprep.mubr.f32.mxu0 0.0
      %v1140 = vand.u32 %v266, 4294901760
      %v1141 = vsub.f32 %v266, %v1140
      %1142 = vmatmul.mubr.f32.gmra.mrb[0].mxu0 %v1141
      %v1143 = vpop.f32.mrb[0].mxu0
      %v1144 = vadd.f32 %v869, %v1143
      %v1145 = vpop.f32.mrb[0].mxu0
      %1146 = vmatprep.mubr.f32.mxu0 0.0
      %v1147 = vand.u32 %v269, 4294901760
      %v1148 = vsub.f32 %v269, %v1147
      %1149 = vmatmul.mubr.f32.gmra.mrb[0].mxu0 %v1148
      %v1150 = vpop.f32.mrb[0].mxu0
      %v1151 = vadd.f32 %v875, %v1150
      %v1152 = vpop.f32.mrb[0].mxu0
      %1153 = vmatprep.mubr.f32.mxu0 0.0
      %v1154 = vand.u32 %v272, 4294901760
      %v1155 = vsub.f32 %v272, %v1154
      %1156 = vmatmul.mubr.f32.gmra.mrb[0].mxu0 %v1155
      %v1157 = vpop.f32.mrb[0].mxu0
      %v1158 = vadd.f32 %v881, %v1157
      %v1159 = vpop.f32.mrb[0].mxu0
      %1160 = vmatprep.mubr.f32.mxu0 0.0
      %v1161 = vand.u32 %v275, 4294901760
      %v1162 = vsub.f32 %v275, %v1161
      %1163 = vmatmul.mubr.f32.gmra.mrb[0].mxu0 %v1162
      %v1164 = vpop.f32.mrb[0].mxu0
      %v1165 = vadd.f32 %v887, %v1164
      %v1166 = vpop.f32.mrb[0].mxu0
      %1167 = vmatprep.mubr.f32.mxu0 0.0
      %v1168 = vand.u32 %v278, 4294901760
      %v1169 = vsub.f32 %v278, %v1168
      %1170 = vmatmul.mubr.f32.gmra.mrb[0].mxu0 %v1169
      %v1171 = vpop.f32.mrb[0].mxu0
      %v1172 = vadd.f32 %v893, %v1171
      %v1173 = vpop.f32.mrb[0].mxu0
      %1174 = vmatprep.mubr.f32.mxu0 0.0
      %v1175 = vand.u32 %v281, 4294901760
      %v1176 = vsub.f32 %v281, %v1175
      %1177 = vmatmul.mubr.f32.gmra.mrb[0].mxu0 %v1176
      %v1178 = vpop.f32.mrb[0].mxu0
      %v1179 = vadd.f32 %v899, %v1178
      %v1180 = vpop.f32.mrb[0].mxu0
      %1181 = vmatprep.mubr.f32.mxu0 0.0
      %v1182 = vand.u32 %v284, 4294901760
      %v1183 = vsub.f32 %v284, %v1182
      %1184 = vmatmul.mubr.f32.gmra.mrb[0].mxu0 %v1183
      %v1185 = vpop.f32.mrb[0].mxu0
      %v1186 = vadd.f32 %v905, %v1185
      %v1187 = vpop.f32.mrb[0].mxu0
      %1188 = vmatprep.mubr.f32.mxu0 0.0
      %v1189 = vand.u32 %v287, 4294901760
      %v1190 = vsub.f32 %v287, %v1189
      %1191 = vmatmul.mubr.f32.gmra.mrb[0].mxu0 %v1190
      %v1192 = vpop.f32.mrb[0].mxu0
      %v1193 = vadd.f32 %v911, %v1192
      %v1194 = vpop.f32.mrb[0].mxu0
      %1195 = vmatprep.mubr.f32.mxu0 0.0
      %v1196 = vand.u32 %v290, 4294901760
      %v1197 = vsub.f32 %v290, %v1196
      %1198 = vmatmul.mubr.f32.gmra.mrb[0].mxu0 %v1197
      %v1199 = vpop.f32.mrb[0].mxu0
      %v1200 = vadd.f32 %v917, %v1199
      %v1201 = vpop.f32.mrb[0].mxu0
      %1202 = vmatprep.mubr.f32.mxu0 0.0
      %v1203 = vand.u32 %v293, 4294901760
      %v1204 = vsub.f32 %v293, %v1203
      %1205 = vmatmul.mubr.f32.gmra.mrb[0].mxu0 %v1204
      %v1206 = vpop.f32.mrb[0].mxu0
      %v1207 = vadd.f32 %v923, %v1206
      %v1208 = vpop.f32.mrb[0].mxu0
      %1209 = vmatprep.mubr.f32.mxu0 0.0
      %v1210 = vand.u32 %v296, 4294901760
      %v1211 = vsub.f32 %v296, %v1210
      %1212 = vmatmul.mubr.f32.gmra.mrb[0].mxu0 %v1211
      %v1213 = vpop.f32.mrb[0].mxu0
      %v1214 = vadd.f32 %v929, %v1213
      %v1215 = vpop.f32.mrb[0].mxu0
      %1216 = vmatprep.mubr.f32.mxu0 0.0
      %v1217 = vand.u32 %v299, 4294901760
      %v1218 = vsub.f32 %v299, %v1217
      %1219 = vmatmul.mubr.f32.gmra.mrb[0].mxu0 %v1218
      %v1220 = vpop.f32.mrb[0].mxu0
      %v1221 = vadd.f32 %v935, %v1220
      %v1222 = vpop.f32.mrb[0].mxu0
      %1223 = vmatprep.mubr.f32.mxu0 0.0
      %v1224 = vand.u32 %v302, 4294901760
      %v1225 = vsub.f32 %v302, %v1224
      %1226 = vmatmul.mubr.f32.gmra.mrb[0].mxu0 %v1225
      %v1227 = vpop.f32.mrb[0].mxu0
      %v1228 = vadd.f32 %v941, %v1227
      %v1229 = vpop.f32.mrb[0].mxu0
      %1230 = vmatprep.mubr.f32.mxu0 0.0
      %v1231 = vand.u32 %v305, 4294901760
      %v1232 = vsub.f32 %v305, %v1231
      %1233 = vmatmul.mubr.f32.gmra.mrb[0].mxu0 %v1232
      %v1234 = vpop.f32.mrb[0].mxu0
      %v1235 = vadd.f32 %v947, %v1234
      %v1236 = vpop.f32.mrb[0].mxu0
      %1237 = vmatprep.mubr.f32.mxu0 0.0
      %v1238 = vand.u32 %v308, 4294901760
      %v1239 = vsub.f32 %v308, %v1238
      %1240 = vmatmul.mubr.f32.gmra.mrb[0].mxu0 %v1239
      %v1241 = vpop.f32.mrb[0].mxu0
      %v1242 = vadd.f32 %v953, %v1241
      %v1243 = vpop.f32.mrb[0].mxu0
      %1244 = vmatprep.mubr.f32.mxu0 0.0
      %v1245 = vand.u32 %v311, 4294901760
      %v1246 = vsub.f32 %v311, %v1245
      %1247 = vmatmul.mubr.f32.gmra.mrb[0].mxu0 %v1246
      %v1248 = vpop.f32.mrb[0].mxu0
      %v1249 = vadd.f32 %v959, %v1248
      %v1250 = vpop.f32.mrb[0].mxu0
      %1251 = vmatprep.mubr.f32.mxu0 0.0
      %v1252 = vand.u32 %v314, 4294901760
      %v1253 = vsub.f32 %v314, %v1252
      %1254 = vmatmul.mubr.f32.gmra.mrb[0].mxu0 %v1253
      %v1255 = vpop.f32.mrb[0].mxu0
      %v1256 = vadd.f32 %v965, %v1255
      %v1257 = vpop.f32.mrb[0].mxu0
      %1258 = vmatprep.mubr.f32.mxu0 0.0
      %v1259 = vand.u32 %v317, 4294901760
      %v1260 = vsub.f32 %v317, %v1259
      %1261 = vmatmul.mubr.f32.gmra.mrb[0].mxu0 %v1260
      %v1262 = vpop.f32.mrb[0].mxu0
      %v1263 = vadd.f32 %v971, %v1262
      %v1264 = vpop.f32.mrb[0].mxu0
      %1265 = vmatprep.mubr.f32.mxu0 0.0
      %v1266 = vand.u32 %v320, 4294901760
      %v1267 = vsub.f32 %v320, %v1266
      %1268 = vmatmul.mubr.f32.gmra.mrb[0].mxu0 %v1267
      %v1269 = vpop.f32.mrb[0].mxu0
      %v1270 = vadd.f32 %v977, %v1269
      %v1271 = vpop.f32.mrb[0].mxu0
      %1272 = vmatprep.mubr.f32.mxu0 0.0
      %v1273 = vand.u32 %v323, 4294901760
      %v1274 = vsub.f32 %v323, %v1273
      %1275 = vmatmul.mubr.f32.gmra.mrb[0].mxu0 %v1274
      %v1276 = vpop.f32.mrb[0].mxu0
      %v1277 = vadd.f32 %v983, %v1276
      %v1278 = vpop.f32.mrb[0].mxu0
      %1279 = vmatprep.mubr.f32.mxu0 0.0
      %v1280 = vand.u32 %v326, 4294901760
      %v1281 = vsub.f32 %v326, %v1280
      %1282 = vmatmul.mubr.f32.gmra.mrb[0].mxu0 %v1281
      %v1283 = vpop.f32.mrb[0].mxu0
      %v1284 = vadd.f32 %v989, %v1283
      %v1285 = vpop.f32.mrb[0].mxu0
      %1286 = vmatprep.mubr.f32.mxu0 0.0
      %v1287 = vand.u32 %v329, 4294901760
      %v1288 = vsub.f32 %v329, %v1287
      %1289 = vmatmul.mubr.f32.gmra.mrb[0].mxu0 %v1288
      %v1290 = vpop.f32.mrb[0].mxu0
      %v1291 = vadd.f32 %v995, %v1290
      %v1292 = vpop.f32.mrb[0].mxu0
      %1293 = vmatprep.mubr.f32.mxu0 0.0
      %v1294 = vand.u32 %v332, 4294901760
      %v1295 = vsub.f32 %v332, %v1294
      %1296 = vmatmul.mubr.f32.gmra.mrb[0].mxu0 %v1295
      %v1297 = vpop.f32.mrb[0].mxu0
      %v1298 = vadd.f32 %v1001, %v1297
      %v1299 = vpop.f32.mrb[0].mxu0
      %1300 = vdwg.mxu0
      %1301 = vmatprep.subr.mxu0 0.0
      %v1302 = vand.u32 %v233, 4294901760
      %1303 = vmatpush1.msra.mxu0 %v1302
      %1304 = vmatprep.subr.mxu0 0.0
      %v1305 = vand.u32 %v234, 4294901760
      %1306 = vmatpush1.msra.mxu0 %v1305
      %1307 = vmatprep.subr.mxu0 0.0
      %v1308 = vand.u32 %v235, 4294901760
      %1309 = vmatpush1.msra.mxu0 %v1308
      %1310 = vmatprep.subr.mxu0 0.0
      %v1311 = vand.u32 %v336, 4294901760
      %1312 = vmatpush1.msra.mxu0 %v1311
      %1313 = vmatprep.subr.mxu0 0.0
      %1314 = vmatpush1.msra.mxu0 0.0
      %1315 = vmatprep.subr.mxu0 0.0
      %1316 = vmatpush1.msra.mxu0 0.0
      %1317 = vmatprep.subr.mxu0 0.0
      %1318 = vmatpush1.msra.mxu0 0.0
      %1319 = vmatprep.subr.mxu0 0.0
      %1320 = vmatpush1.msra.mxu0 0.0
      %1321 = vmatprep.subr.mxu0 0.0
      %1322 = vmatpush1.msra.mxu0 0.0
      %1323 = vmatprep.subr.mxu0 0.0
      %1324 = vmatpush1.msra.mxu0 0.0
      %1325 = vmatprep.subr.mxu0 0.0
      %1326 = vmatpush1.msra.mxu0 0.0
      %1327 = vmatprep.subr.mxu0 0.0
      %1328 = vmatpush1.msra.mxu0 0.0
      %1329 = vmatprep.subr.mxu0 0.0
      %1330 = vmatpush1.msra.mxu0 0.0
      %1331 = vmatprep.subr.mxu0 0.0
      %1332 = vmatpush1.msra.mxu0 0.0
      %1333 = vmatprep.subr.mxu0 0.0
      %1334 = vmatpush1.msra.mxu0 0.0
      %1335 = vmatprep.subr.mxu0 0.0
      %1336 = vmatpush1.msra.mxu0 0.0
      %1337 = vmatprep.subr.mxu0 0.0
      %1338 = vmatpush1.msra.mxu0 0.0
      %1339 = vmatprep.subr.mxu0 0.0
      %1340 = vmatpush1.msra.mxu0 0.0
      %1341 = vmatprep.subr.mxu0 0.0
      %1342 = vmatpush1.msra.mxu0 0.0
      %1343 = vmatprep.subr.mxu0 0.0
      %1344 = vmatpush1.msra.mxu0 0.0
      %1345 = vmatprep.subr.mxu0 0.0
      %1346 = vmatpush1.msra.mxu0 0.0
      %1347 = vmatprep.subr.mxu0 0.0
      %1348 = vmatpush1.msra.mxu0 0.0
      %1349 = vmatprep.subr.mxu0 0.0
      %1350 = vmatpush1.msra.mxu0 0.0
      %1351 = vmatprep.subr.mxu0 0.0
      %1352 = vmatpush1.msra.mxu0 0.0
      %1353 = vmatprep.subr.mxu0 0.0
      %1354 = vmatpush1.msra.mxu0 0.0
      %1355 = vmatprep.subr.mxu0 0.0
      %1356 = vmatpush1.msra.mxu0 0.0
      %1357 = vmatprep.subr.mxu0 0.0
      %1358 = vmatpush1.msra.mxu0 0.0
      %1359 = vmatprep.subr.mxu0 0.0
      %1360 = vmatpush1.msra.mxu0 0.0
      %1361 = vmatprep.subr.mxu0 0.0
      %1362 = vmatpush1.msra.mxu0 0.0
      %1363 = vmatprep.subr.mxu0 0.0
      %1364 = vmatpush1.msra.mxu0 0.0
      %1365 = vmatprep.subr.mxu0 0.0
      %1366 = vmatpush1.msra.mxu0 0.0
      %1367 = vmatprep.subr.mxu0 0.0
      %1368 = vmatpush1.msra.mxu0 0.0
      %1369 = vmatprep.mubr.f32.mxu0 0.0
      %v1370 = vand.u32 %v239, 4294901760
      %v1371 = vsub.f32 %v239, %v1370
      %v1372 = vand.u32 %v1371, 4294901760
      %1373 = vmatmul.mubr.f32.gmra.mrb[0].mxu0 %v1372
      %v1374 = vpop.f32.mrb[0].mxu0
      %v1375 = vadd.f32 %v1081, %v1374
      %v1376 = vpop.f32.mrb[0].mxu0
      %1377 = vmatprep.mubr.f32.mxu0 0.0
      %v1378 = vand.u32 %v242, 4294901760
      %v1379 = vsub.f32 %v242, %v1378
      %v1380 = vand.u32 %v1379, 4294901760
      %1381 = vmatmul.mubr.f32.gmra.mrb[0].mxu0 %v1380
      %v1382 = vpop.f32.mrb[0].mxu0
      %v1383 = vadd.f32 %v1088, %v1382
      %v1384 = vpop.f32.mrb[0].mxu0
      %1385 = vmatprep.mubr.f32.mxu0 0.0
      %v1386 = vand.u32 %v245, 4294901760
      %v1387 = vsub.f32 %v245, %v1386
      %v1388 = vand.u32 %v1387, 4294901760
      %1389 = vmatmul.mubr.f32.gmra.mrb[0].mxu0 %v1388
      %v1390 = vpop.f32.mrb[0].mxu0
      %v1391 = vadd.f32 %v1095, %v1390
      %v1392 = vpop.f32.mrb[0].mxu0
      %1393 = vmatprep.mubr.f32.mxu0 0.0
      %v1394 = vand.u32 %v248, 4294901760
      %v1395 = vsub.f32 %v248, %v1394
      %v1396 = vand.u32 %v1395, 4294901760
      %1397 = vmatmul.mubr.f32.gmra.mrb[0].mxu0 %v1396
      %v1398 = vpop.f32.mrb[0].mxu0
      %v1399 = vadd.f32 %v1102, %v1398
      %v1400 = vpop.f32.mrb[0].mxu0
      %1401 = vmatprep.mubr.f32.mxu0 0.0
      %v1402 = vand.u32 %v251, 4294901760
      %v1403 = vsub.f32 %v251, %v1402
      %v1404 = vand.u32 %v1403, 4294901760
      %1405 = vmatmul.mubr.f32.gmra.mrb[0].mxu0 %v1404
      %v1406 = vpop.f32.mrb[0].mxu0
      %v1407 = vadd.f32 %v1109, %v1406
      %v1408 = vpop.f32.mrb[0].mxu0
      %1409 = vmatprep.mubr.f32.mxu0 0.0
      %v1410 = vand.u32 %v254, 4294901760
      %v1411 = vsub.f32 %v254, %v1410
      %v1412 = vand.u32 %v1411, 4294901760
      %1413 = vmatmul.mubr.f32.gmra.mrb[0].mxu0 %v1412
      %v1414 = vpop.f32.mrb[0].mxu0
      %v1415 = vadd.f32 %v1116, %v1414
      %v1416 = vpop.f32.mrb[0].mxu0
      %1417 = vmatprep.mubr.f32.mxu0 0.0
      %v1418 = vand.u32 %v257, 4294901760
      %v1419 = vsub.f32 %v257, %v1418
      %v1420 = vand.u32 %v1419, 4294901760
      %1421 = vmatmul.mubr.f32.gmra.mrb[0].mxu0 %v1420
      %v1422 = vpop.f32.mrb[0].mxu0
      %v1423 = vadd.f32 %v1123, %v1422
      %v1424 = vpop.f32.mrb[0].mxu0
      %1425 = vmatprep.mubr.f32.mxu0 0.0
      %v1426 = vand.u32 %v260, 4294901760
      %v1427 = vsub.f32 %v260, %v1426
      %v1428 = vand.u32 %v1427, 4294901760
      %1429 = vmatmul.mubr.f32.gmra.mrb[0].mxu0 %v1428
      %v1430 = vpop.f32.mrb[0].mxu0
      %v1431 = vadd.f32 %v1130, %v1430
      %v1432 = vpop.f32.mrb[0].mxu0
      %1433 = vmatprep.mubr.f32.mxu0 0.0
      %v1434 = vand.u32 %v263, 4294901760
      %v1435 = vsub.f32 %v263, %v1434
      %v1436 = vand.u32 %v1435, 4294901760
      %1437 = vmatmul.mubr.f32.gmra.mrb[0].mxu0 %v1436
      %v1438 = vpop.f32.mrb[0].mxu0
      %v1439 = vadd.f32 %v1137, %v1438
      %v1440 = vpop.f32.mrb[0].mxu0
      %1441 = vmatprep.mubr.f32.mxu0 0.0
      %v1442 = vand.u32 %v266, 4294901760
      %v1443 = vsub.f32 %v266, %v1442
      %v1444 = vand.u32 %v1443, 4294901760
      %1445 = vmatmul.mubr.f32.gmra.mrb[0].mxu0 %v1444
      %v1446 = vpop.f32.mrb[0].mxu0
      %v1447 = vadd.f32 %v1144, %v1446
      %v1448 = vpop.f32.mrb[0].mxu0
      %1449 = vmatprep.mubr.f32.mxu0 0.0
      %v1450 = vand.u32 %v269, 4294901760
      %v1451 = vsub.f32 %v269, %v1450
      %v1452 = vand.u32 %v1451, 4294901760
      %1453 = vmatmul.mubr.f32.gmra.mrb[0].mxu0 %v1452
      %v1454 = vpop.f32.mrb[0].mxu0
      %v1455 = vadd.f32 %v1151, %v1454
      %v1456 = vpop.f32.mrb[0].mxu0
      %1457 = vmatprep.mubr.f32.mxu0 0.0
      %v1458 = vand.u32 %v272, 4294901760
      %v1459 = vsub.f32 %v272, %v1458
      %v1460 = vand.u32 %v1459, 4294901760
      %1461 = vmatmul.mubr.f32.gmra.mrb[0].mxu0 %v1460
      %v1462 = vpop.f32.mrb[0].mxu0
      %v1463 = vadd.f32 %v1158, %v1462
      %v1464 = vpop.f32.mrb[0].mxu0
      %1465 = vmatprep.mubr.f32.mxu0 0.0
      %v1466 = vand.u32 %v275, 4294901760
      %v1467 = vsub.f32 %v275, %v1466
      %v1468 = vand.u32 %v1467, 4294901760
      %1469 = vmatmul.mubr.f32.gmra.mrb[0].mxu0 %v1468
      %v1470 = vpop.f32.mrb[0].mxu0
      %v1471 = vadd.f32 %v1165, %v1470
      %v1472 = vpop.f32.mrb[0].mxu0
      %1473 = vmatprep.mubr.f32.mxu0 0.0
      %v1474 = vand.u32 %v278, 4294901760
      %v1475 = vsub.f32 %v278, %v1474
      %v1476 = vand.u32 %v1475, 4294901760
      %1477 = vmatmul.mubr.f32.gmra.mrb[0].mxu0 %v1476
      %v1478 = vpop.f32.mrb[0].mxu0
      %v1479 = vadd.f32 %v1172, %v1478
      %v1480 = vpop.f32.mrb[0].mxu0
      %1481 = vmatprep.mubr.f32.mxu0 0.0
      %v1482 = vand.u32 %v281, 4294901760
      %v1483 = vsub.f32 %v281, %v1482
      %v1484 = vand.u32 %v1483, 4294901760
      %1485 = vmatmul.mubr.f32.gmra.mrb[0].mxu0 %v1484
      %v1486 = vpop.f32.mrb[0].mxu0
      %v1487 = vadd.f32 %v1179, %v1486
      %v1488 = vpop.f32.mrb[0].mxu0
      %1489 = vmatprep.mubr.f32.mxu0 0.0
      %v1490 = vand.u32 %v284, 4294901760
      %v1491 = vsub.f32 %v284, %v1490
      %v1492 = vand.u32 %v1491, 4294901760
      %1493 = vmatmul.mubr.f32.gmra.mrb[0].mxu0 %v1492
      %v1494 = vpop.f32.mrb[0].mxu0
      %v1495 = vadd.f32 %v1186, %v1494
      %v1496 = vpop.f32.mrb[0].mxu0
      %1497 = vmatprep.mubr.f32.mxu0 0.0
      %v1498 = vand.u32 %v287, 4294901760
      %v1499 = vsub.f32 %v287, %v1498
      %v1500 = vand.u32 %v1499, 4294901760
      %1501 = vmatmul.mubr.f32.gmra.mrb[0].mxu0 %v1500
      %v1502 = vpop.f32.mrb[0].mxu0
      %v1503 = vadd.f32 %v1193, %v1502
      %v1504 = vpop.f32.mrb[0].mxu0
      %1505 = vmatprep.mubr.f32.mxu0 0.0
      %v1506 = vand.u32 %v290, 4294901760
      %v1507 = vsub.f32 %v290, %v1506
      %v1508 = vand.u32 %v1507, 4294901760
      %1509 = vmatmul.mubr.f32.gmra.mrb[0].mxu0 %v1508
      %v1510 = vpop.f32.mrb[0].mxu0
      %v1511 = vadd.f32 %v1200, %v1510
      %v1512 = vpop.f32.mrb[0].mxu0
      %1513 = vmatprep.mubr.f32.mxu0 0.0
      %v1514 = vand.u32 %v293, 4294901760
      %v1515 = vsub.f32 %v293, %v1514
      %v1516 = vand.u32 %v1515, 4294901760
      %1517 = vmatmul.mubr.f32.gmra.mrb[0].mxu0 %v1516
      %v1518 = vpop.f32.mrb[0].mxu0
      %v1519 = vadd.f32 %v1207, %v1518
      %v1520 = vpop.f32.mrb[0].mxu0
      %1521 = vmatprep.mubr.f32.mxu0 0.0
      %v1522 = vand.u32 %v296, 4294901760
      %v1523 = vsub.f32 %v296, %v1522
      %v1524 = vand.u32 %v1523, 4294901760
      %1525 = vmatmul.mubr.f32.gmra.mrb[0].mxu0 %v1524
      %v1526 = vpop.f32.mrb[0].mxu0
      %v1527 = vadd.f32 %v1214, %v1526
      %v1528 = vpop.f32.mrb[0].mxu0
      %1529 = vmatprep.mubr.f32.mxu0 0.0
      %v1530 = vand.u32 %v299, 4294901760
      %v1531 = vsub.f32 %v299, %v1530
      %v1532 = vand.u32 %v1531, 4294901760
      %1533 = vmatmul.mubr.f32.gmra.mrb[0].mxu0 %v1532
      %v1534 = vpop.f32.mrb[0].mxu0
      %v1535 = vadd.f32 %v1221, %v1534
      %v1536 = vpop.f32.mrb[0].mxu0
      %1537 = vmatprep.mubr.f32.mxu0 0.0
      %v1538 = vand.u32 %v302, 4294901760
      %v1539 = vsub.f32 %v302, %v1538
      %v1540 = vand.u32 %v1539, 4294901760
      %1541 = vmatmul.mubr.f32.gmra.mrb[0].mxu0 %v1540
      %v1542 = vpop.f32.mrb[0].mxu0
      %v1543 = vadd.f32 %v1228, %v1542
      %v1544 = vpop.f32.mrb[0].mxu0
      %1545 = vmatprep.mubr.f32.mxu0 0.0
      %v1546 = vand.u32 %v305, 4294901760
      %v1547 = vsub.f32 %v305, %v1546
      %v1548 = vand.u32 %v1547, 4294901760
      %1549 = vmatmul.mubr.f32.gmra.mrb[0].mxu0 %v1548
      %v1550 = vpop.f32.mrb[0].mxu0
      %v1551 = vadd.f32 %v1235, %v1550
      %v1552 = vpop.f32.mrb[0].mxu0
      %1553 = vmatprep.mubr.f32.mxu0 0.0
      %v1554 = vand.u32 %v308, 4294901760
      %v1555 = vsub.f32 %v308, %v1554
      %v1556 = vand.u32 %v1555, 4294901760
      %1557 = vmatmul.mubr.f32.gmra.mrb[0].mxu0 %v1556
      %v1558 = vpop.f32.mrb[0].mxu0
      %v1559 = vadd.f32 %v1242, %v1558
      %v1560 = vpop.f32.mrb[0].mxu0
      %1561 = vmatprep.mubr.f32.mxu0 0.0
      %v1562 = vand.u32 %v311, 4294901760
      %v1563 = vsub.f32 %v311, %v1562
      %v1564 = vand.u32 %v1563, 4294901760
      %1565 = vmatmul.mubr.f32.gmra.mrb[0].mxu0 %v1564
      %v1566 = vpop.f32.mrb[0].mxu0
      %v1567 = vadd.f32 %v1249, %v1566
      %v1568 = vpop.f32.mrb[0].mxu0
      %1569 = vmatprep.mubr.f32.mxu0 0.0
      %v1570 = vand.u32 %v314, 4294901760
      %v1571 = vsub.f32 %v314, %v1570
      %v1572 = vand.u32 %v1571, 4294901760
      %1573 = vmatmul.mubr.f32.gmra.mrb[0].mxu0 %v1572
      %v1574 = vpop.f32.mrb[0].mxu0
      %v1575 = vadd.f32 %v1256, %v1574
      %v1576 = vpop.f32.mrb[0].mxu0
      %1577 = vmatprep.mubr.f32.mxu0 0.0
      %v1578 = vand.u32 %v317, 4294901760
      %v1579 = vsub.f32 %v317, %v1578
      %v1580 = vand.u32 %v1579, 4294901760
      %1581 = vmatmul.mubr.f32.gmra.mrb[0].mxu0 %v1580
      %v1582 = vpop.f32.mrb[0].mxu0
      %v1583 = vadd.f32 %v1263, %v1582
      %v1584 = vpop.f32.mrb[0].mxu0
      %1585 = vmatprep.mubr.f32.mxu0 0.0
      %v1586 = vand.u32 %v320, 4294901760
      %v1587 = vsub.f32 %v320, %v1586
      %v1588 = vand.u32 %v1587, 4294901760
      %1589 = vmatmul.mubr.f32.gmra.mrb[0].mxu0 %v1588
      %v1590 = vpop.f32.mrb[0].mxu0
      %v1591 = vadd.f32 %v1270, %v1590
      %v1592 = vpop.f32.mrb[0].mxu0
      %1593 = vmatprep.mubr.f32.mxu0 0.0
      %v1594 = vand.u32 %v323, 4294901760
      %v1595 = vsub.f32 %v323, %v1594
      %v1596 = vand.u32 %v1595, 4294901760
      %1597 = vmatmul.mubr.f32.gmra.mrb[0].mxu0 %v1596
      %v1598 = vpop.f32.mrb[0].mxu0
      %v1599 = vadd.f32 %v1277, %v1598
      %v1600 = vpop.f32.mrb[0].mxu0
      %1601 = vmatprep.mubr.f32.mxu0 0.0
      %v1602 = vand.u32 %v326, 4294901760
      %v1603 = vsub.f32 %v326, %v1602
      %v1604 = vand.u32 %v1603, 4294901760
      %1605 = vmatmul.mubr.f32.gmra.mrb[0].mxu0 %v1604
      %v1606 = vpop.f32.mrb[0].mxu0
      %v1607 = vadd.f32 %v1284, %v1606
      %v1608 = vpop.f32.mrb[0].mxu0
      %1609 = vmatprep.mubr.f32.mxu0 0.0
      %v1610 = vand.u32 %v329, 4294901760
      %v1611 = vsub.f32 %v329, %v1610
      %v1612 = vand.u32 %v1611, 4294901760
      %1613 = vmatmul.mubr.f32.gmra.mrb[0].mxu0 %v1612
      %v1614 = vpop.f32.mrb[0].mxu0
      %v1615 = vadd.f32 %v1291, %v1614
      %v1616 = vpop.f32.mrb[0].mxu0
      %1617 = vmatprep.mubr.f32.mxu0 0.0
      %v1618 = vand.u32 %v332, 4294901760
      %v1619 = vsub.f32 %v332, %v1618
      %v1620 = vand.u32 %v1619, 4294901760
      %1621 = vmatmul.mubr.f32.gmra.mrb[0].mxu0 %v1620
      %v1622 = vpop.f32.mrb[0].mxu0
      %v1623 = vadd.f32 %v1298, %v1622
      %v1624 = vpop.f32.mrb[0].mxu0
      %1625 = vdwg.mxu0
      %1626 = vmatprep.subr.mxu0 0.0
      %v1627 = vand.u32 %v233, 4294901760
      %v1628 = vsub.f32 %v233, %v1627
      %v1629 = vand.u32 %v1628, 4294901760
      %1630 = vmatpush1.msra.mxu0 %v1629
      %1631 = vmatprep.subr.mxu0 0.0
      %v1632 = vand.u32 %v234, 4294901760
      %v1633 = vsub.f32 %v234, %v1632
      %v1634 = vand.u32 %v1633, 4294901760
      %1635 = vmatpush1.msra.mxu0 %v1634
      %1636 = vmatprep.subr.mxu0 0.0
      %v1637 = vand.u32 %v235, 4294901760
      %v1638 = vsub.f32 %v235, %v1637
      %v1639 = vand.u32 %v1638, 4294901760
      %1640 = vmatpush1.msra.mxu0 %v1639
      %1641 = vmatprep.subr.mxu0 0.0
      %v1642 = vand.u32 %v336, 4294901760
      %v1643 = vsub.f32 %v336, %v1642
      %v1644 = vand.u32 %v1643, 4294901760
      %1645 = vmatpush1.msra.mxu0 %v1644
      %1646 = vmatprep.subr.mxu0 0.0
      %1647 = vmatpush1.msra.mxu0 0.0
      %1648 = vmatprep.subr.mxu0 0.0
      %1649 = vmatpush1.msra.mxu0 0.0
      %1650 = vmatprep.subr.mxu0 0.0
      %1651 = vmatpush1.msra.mxu0 0.0
      %1652 = vmatprep.subr.mxu0 0.0
      %1653 = vmatpush1.msra.mxu0 0.0
      %1654 = vmatprep.subr.mxu0 0.0
      %1655 = vmatpush1.msra.mxu0 0.0
      %1656 = vmatprep.subr.mxu0 0.0
      %1657 = vmatpush1.msra.mxu0 0.0
      %1658 = vmatprep.subr.mxu0 0.0
      %1659 = vmatpush1.msra.mxu0 0.0
      %1660 = vmatprep.subr.mxu0 0.0
      %1661 = vmatpush1.msra.mxu0 0.0
      %1662 = vmatprep.subr.mxu0 0.0
      %1663 = vmatpush1.msra.mxu0 0.0
      %1664 = vmatprep.subr.mxu0 0.0
      %1665 = vmatpush1.msra.mxu0 0.0
      %1666 = vmatprep.subr.mxu0 0.0
      %1667 = vmatpush1.msra.mxu0 0.0
      %1668 = vmatprep.subr.mxu0 0.0
      %1669 = vmatpush1.msra.mxu0 0.0
      %1670 = vmatprep.subr.mxu0 0.0
      %1671 = vmatpush1.msra.mxu0 0.0
      %1672 = vmatprep.subr.mxu0 0.0
      %1673 = vmatpush1.msra.mxu0 0.0
      %1674 = vmatprep.subr.mxu0 0.0
      %1675 = vmatpush1.msra.mxu0 0.0
      %1676 = vmatprep.subr.mxu0 0.0
      %1677 = vmatpush1.msra.mxu0 0.0
      %1678 = vmatprep.subr.mxu0 0.0
      %1679 = vmatpush1.msra.mxu0 0.0
      %1680 = vmatprep.subr.mxu0 0.0
      %1681 = vmatpush1.msra.mxu0 0.0
      %1682 = vmatprep.subr.mxu0 0.0
      %1683 = vmatpush1.msra.mxu0 0.0
      %1684 = vmatprep.subr.mxu0 0.0
      %1685 = vmatpush1.msra.mxu0 0.0
      %1686 = vmatprep.subr.mxu0 0.0
      %1687 = vmatpush1.msra.mxu0 0.0
      %1688 = vmatprep.subr.mxu0 0.0
      %1689 = vmatpush1.msra.mxu0 0.0
      %1690 = vmatprep.subr.mxu0 0.0
      %1691 = vmatpush1.msra.mxu0 0.0
      %1692 = vmatprep.subr.mxu0 0.0
      %1693 = vmatpush1.msra.mxu0 0.0
      %1694 = vmatprep.subr.mxu0 0.0
      %1695 = vmatpush1.msra.mxu0 0.0
      %1696 = vmatprep.subr.mxu0 0.0
      %1697 = vmatpush1.msra.mxu0 0.0
      %1698 = vmatprep.subr.mxu0 0.0
      %1699 = vmatpush1.msra.mxu0 0.0
      %1700 = vmatprep.subr.mxu0 0.0
      %1701 = vmatpush1.msra.mxu0 0.0
      %1702 = vmatprep.mubr.f32.mxu0 0.0
      %v1703 = vand.u32 %v239, 4294901760
      %1704 = vmatmul.mubr.f32.gmra.mrb[0].mxu0 %v1703
      %v1705 = vpop.f32.mrb[0].mxu0
      %v1706 = vadd.f32 %v1375, %v1705
      %v1707 = vpop.f32.mrb[0].mxu0
      %1708 = vmatprep.mubr.f32.mxu0 0.0
      %v1709 = vand.u32 %v242, 4294901760
      %1710 = vmatmul.mubr.f32.gmra.mrb[0].mxu0 %v1709
      %v1711 = vpop.f32.mrb[0].mxu0
      %v1712 = vadd.f32 %v1383, %v1711
      %v1713 = vpop.f32.mrb[0].mxu0
      %1714 = vmatprep.mubr.f32.mxu0 0.0
      %v1715 = vand.u32 %v245, 4294901760
      %1716 = vmatmul.mubr.f32.gmra.mrb[0].mxu0 %v1715
      %v1717 = vpop.f32.mrb[0].mxu0
      %v1718 = vadd.f32 %v1391, %v1717
      %v1719 = vpop.f32.mrb[0].mxu0
      %1720 = vmatprep.mubr.f32.mxu0 0.0
      %v1721 = vand.u32 %v248, 4294901760
      %1722 = vmatmul.mubr.f32.gmra.mrb[0].mxu0 %v1721
      %v1723 = vpop.f32.mrb[0].mxu0
      %v1724 = vadd.f32 %v1399, %v1723
      %v1725 = vpop.f32.mrb[0].mxu0
      %1726 = vmatprep.mubr.f32.mxu0 0.0
      %v1727 = vand.u32 %v251, 4294901760
      %1728 = vmatmul.mubr.f32.gmra.mrb[0].mxu0 %v1727
      %v1729 = vpop.f32.mrb[0].mxu0
      %v1730 = vadd.f32 %v1407, %v1729
      %v1731 = vpop.f32.mrb[0].mxu0
      %1732 = vmatprep.mubr.f32.mxu0 0.0
      %v1733 = vand.u32 %v254, 4294901760
      %1734 = vmatmul.mubr.f32.gmra.mrb[0].mxu0 %v1733
      %v1735 = vpop.f32.mrb[0].mxu0
      %v1736 = vadd.f32 %v1415, %v1735
      %v1737 = vpop.f32.mrb[0].mxu0
      %1738 = vmatprep.mubr.f32.mxu0 0.0
      %v1739 = vand.u32 %v257, 4294901760
      %1740 = vmatmul.mubr.f32.gmra.mrb[0].mxu0 %v1739
      %v1741 = vpop.f32.mrb[0].mxu0
      %v1742 = vadd.f32 %v1423, %v1741
      %v1743 = vpop.f32.mrb[0].mxu0
      %1744 = vmatprep.mubr.f32.mxu0 0.0
      %v1745 = vand.u32 %v260, 4294901760
      %1746 = vmatmul.mubr.f32.gmra.mrb[0].mxu0 %v1745
      %v1747 = vpop.f32.mrb[0].mxu0
      %v1748 = vadd.f32 %v1431, %v1747
      %v1749 = vpop.f32.mrb[0].mxu0
      %1750 = vmatprep.mubr.f32.mxu0 0.0
      %v1751 = vand.u32 %v263, 4294901760
      %1752 = vmatmul.mubr.f32.gmra.mrb[0].mxu0 %v1751
      %v1753 = vpop.f32.mrb[0].mxu0
      %v1754 = vadd.f32 %v1439, %v1753
      %v1755 = vpop.f32.mrb[0].mxu0
      %1756 = vmatprep.mubr.f32.mxu0 0.0
      %v1757 = vand.u32 %v266, 4294901760
      %1758 = vmatmul.mubr.f32.gmra.mrb[0].mxu0 %v1757
      %v1759 = vpop.f32.mrb[0].mxu0
      %v1760 = vadd.f32 %v1447, %v1759
      %v1761 = vpop.f32.mrb[0].mxu0
      %1762 = vmatprep.mubr.f32.mxu0 0.0
      %v1763 = vand.u32 %v269, 4294901760
      %1764 = vmatmul.mubr.f32.gmra.mrb[0].mxu0 %v1763
      %v1765 = vpop.f32.mrb[0].mxu0
      %v1766 = vadd.f32 %v1455, %v1765
      %v1767 = vpop.f32.mrb[0].mxu0
      %1768 = vmatprep.mubr.f32.mxu0 0.0
      %v1769 = vand.u32 %v272, 4294901760
      %1770 = vmatmul.mubr.f32.gmra.mrb[0].mxu0 %v1769
      %v1771 = vpop.f32.mrb[0].mxu0
      %v1772 = vadd.f32 %v1463, %v1771
      %v1773 = vpop.f32.mrb[0].mxu0
      %1774 = vmatprep.mubr.f32.mxu0 0.0
      %v1775 = vand.u32 %v275, 4294901760
      %1776 = vmatmul.mubr.f32.gmra.mrb[0].mxu0 %v1775
      %v1777 = vpop.f32.mrb[0].mxu0
      %v1778 = vadd.f32 %v1471, %v1777
      %v1779 = vpop.f32.mrb[0].mxu0
      %1780 = vmatprep.mubr.f32.mxu0 0.0
      %v1781 = vand.u32 %v278, 4294901760
      %1782 = vmatmul.mubr.f32.gmra.mrb[0].mxu0 %v1781
      %v1783 = vpop.f32.mrb[0].mxu0
      %v1784 = vadd.f32 %v1479, %v1783
      %v1785 = vpop.f32.mrb[0].mxu0
      %1786 = vmatprep.mubr.f32.mxu0 0.0
      %v1787 = vand.u32 %v281, 4294901760
      %1788 = vmatmul.mubr.f32.gmra.mrb[0].mxu0 %v1787
      %v1789 = vpop.f32.mrb[0].mxu0
      %v1790 = vadd.f32 %v1487, %v1789
      %v1791 = vpop.f32.mrb[0].mxu0
      %1792 = vmatprep.mubr.f32.mxu0 0.0
      %v1793 = vand.u32 %v284, 4294901760
      %1794 = vmatmul.mubr.f32.gmra.mrb[0].mxu0 %v1793
      %v1795 = vpop.f32.mrb[0].mxu0
      %v1796 = vadd.f32 %v1495, %v1795
      %v1797 = vpop.f32.mrb[0].mxu0
      %1798 = vmatprep.mubr.f32.mxu0 0.0
      %v1799 = vand.u32 %v287, 4294901760
      %1800 = vmatmul.mubr.f32.gmra.mrb[0].mxu0 %v1799
      %v1801 = vpop.f32.mrb[0].mxu0
      %v1802 = vadd.f32 %v1503, %v1801
      %v1803 = vpop.f32.mrb[0].mxu0
      %1804 = vmatprep.mubr.f32.mxu0 0.0
      %v1805 = vand.u32 %v290, 4294901760
      %1806 = vmatmul.mubr.f32.gmra.mrb[0].mxu0 %v1805
      %v1807 = vpop.f32.mrb[0].mxu0
      %v1808 = vadd.f32 %v1511, %v1807
      %v1809 = vpop.f32.mrb[0].mxu0
      %1810 = vmatprep.mubr.f32.mxu0 0.0
      %v1811 = vand.u32 %v293, 4294901760
      %1812 = vmatmul.mubr.f32.gmra.mrb[0].mxu0 %v1811
      %v1813 = vpop.f32.mrb[0].mxu0
      %v1814 = vadd.f32 %v1519, %v1813
      %v1815 = vpop.f32.mrb[0].mxu0
      %1816 = vmatprep.mubr.f32.mxu0 0.0
      %v1817 = vand.u32 %v296, 4294901760
      %1818 = vmatmul.mubr.f32.gmra.mrb[0].mxu0 %v1817
      %v1819 = vpop.f32.mrb[0].mxu0
      %v1820 = vadd.f32 %v1527, %v1819
      %v1821 = vpop.f32.mrb[0].mxu0
      %1822 = vmatprep.mubr.f32.mxu0 0.0
      %v1823 = vand.u32 %v299, 4294901760
      %1824 = vmatmul.mubr.f32.gmra.mrb[0].mxu0 %v1823
      %v1825 = vpop.f32.mrb[0].mxu0
      %v1826 = vadd.f32 %v1535, %v1825
      %v1827 = vpop.f32.mrb[0].mxu0
      %1828 = vmatprep.mubr.f32.mxu0 0.0
      %v1829 = vand.u32 %v302, 4294901760
      %1830 = vmatmul.mubr.f32.gmra.mrb[0].mxu0 %v1829
      %v1831 = vpop.f32.mrb[0].mxu0
      %v1832 = vadd.f32 %v1543, %v1831
      %v1833 = vpop.f32.mrb[0].mxu0
      %1834 = vmatprep.mubr.f32.mxu0 0.0
      %v1835 = vand.u32 %v305, 4294901760
      %1836 = vmatmul.mubr.f32.gmra.mrb[0].mxu0 %v1835
      %v1837 = vpop.f32.mrb[0].mxu0
      %v1838 = vadd.f32 %v1551, %v1837
      %v1839 = vpop.f32.mrb[0].mxu0
      %1840 = vmatprep.mubr.f32.mxu0 0.0
      %v1841 = vand.u32 %v308, 4294901760
      %1842 = vmatmul.mubr.f32.gmra.mrb[0].mxu0 %v1841
      %v1843 = vpop.f32.mrb[0].mxu0
      %v1844 = vadd.f32 %v1559, %v1843
      %v1845 = vpop.f32.mrb[0].mxu0
      %1846 = vmatprep.mubr.f32.mxu0 0.0
      %v1847 = vand.u32 %v311, 4294901760
      %1848 = vmatmul.mubr.f32.gmra.mrb[0].mxu0 %v1847
      %v1849 = vpop.f32.mrb[0].mxu0
      %v1850 = vadd.f32 %v1567, %v1849
      %v1851 = vpop.f32.mrb[0].mxu0
      %1852 = vmatprep.mubr.f32.mxu0 0.0
      %v1853 = vand.u32 %v314, 4294901760
      %1854 = vmatmul.mubr.f32.gmra.mrb[0].mxu0 %v1853
      %v1855 = vpop.f32.mrb[0].mxu0
      %v1856 = vadd.f32 %v1575, %v1855
      %v1857 = vpop.f32.mrb[0].mxu0
      %1858 = vmatprep.mubr.f32.mxu0 0.0
      %v1859 = vand.u32 %v317, 4294901760
      %1860 = vmatmul.mubr.f32.gmra.mrb[0].mxu0 %v1859
      %v1861 = vpop.f32.mrb[0].mxu0
      %v1862 = vadd.f32 %v1583, %v1861
      %v1863 = vpop.f32.mrb[0].mxu0
      %1864 = vmatprep.mubr.f32.mxu0 0.0
      %v1865 = vand.u32 %v320, 4294901760
      %1866 = vmatmul.mubr.f32.gmra.mrb[0].mxu0 %v1865
      %v1867 = vpop.f32.mrb[0].mxu0
      %v1868 = vadd.f32 %v1591, %v1867
      %v1869 = vpop.f32.mrb[0].mxu0
      %1870 = vmatprep.mubr.f32.mxu0 0.0
      %v1871 = vand.u32 %v323, 4294901760
      %1872 = vmatmul.mubr.f32.gmra.mrb[0].mxu0 %v1871
      %v1873 = vpop.f32.mrb[0].mxu0
      %v1874 = vadd.f32 %v1599, %v1873
      %v1875 = vpop.f32.mrb[0].mxu0
      %1876 = vmatprep.mubr.f32.mxu0 0.0
      %v1877 = vand.u32 %v326, 4294901760
      %1878 = vmatmul.mubr.f32.gmra.mrb[0].mxu0 %v1877
      %v1879 = vpop.f32.mrb[0].mxu0
      %v1880 = vadd.f32 %v1607, %v1879
      %v1881 = vpop.f32.mrb[0].mxu0
      %1882 = vmatprep.mubr.f32.mxu0 0.0
      %v1883 = vand.u32 %v329, 4294901760
      %1884 = vmatmul.mubr.f32.gmra.mrb[0].mxu0 %v1883
      %v1885 = vpop.f32.mrb[0].mxu0
      %v1886 = vadd.f32 %v1615, %v1885
      %v1887 = vpop.f32.mrb[0].mxu0
      %1888 = vmatprep.mubr.f32.mxu0 0.0
      %v1889 = vand.u32 %v332, 4294901760
      %1890 = vmatmul.mubr.f32.gmra.mrb[0].mxu0 %v1889
      %v1891 = vpop.f32.mrb[0].mxu0
      %v1892 = vadd.f32 %v1623, %v1891
      %v1893 = vpop.f32.mrb[0].mxu0
      %1894 = vdwg.mxu0
      %1895 = vmatprep.subr.mxu0 0.0
      %v1896 = vand.u32 %v233, 4294901760
      %1897 = vmatpush1.msra.mxu0 %v1896
      %1898 = vmatprep.subr.mxu0 0.0
      %v1899 = vand.u32 %v234, 4294901760
      %1900 = vmatpush1.msra.mxu0 %v1899
      %1901 = vmatprep.subr.mxu0 0.0
      %v1902 = vand.u32 %v235, 4294901760
      %1903 = vmatpush1.msra.mxu0 %v1902
      %1904 = vmatprep.subr.mxu0 0.0
      %v1905 = vand.u32 %v336, 4294901760
      %1906 = vmatpush1.msra.mxu0 %v1905
      %1907 = vmatprep.subr.mxu0 0.0
      %1908 = vmatpush1.msra.mxu0 0.0
      %1909 = vmatprep.subr.mxu0 0.0
      %1910 = vmatpush1.msra.mxu0 0.0
      %1911 = vmatprep.subr.mxu0 0.0
      %1912 = vmatpush1.msra.mxu0 0.0
      %1913 = vmatprep.subr.mxu0 0.0
      %1914 = vmatpush1.msra.mxu0 0.0
      %1915 = vmatprep.subr.mxu0 0.0
      %1916 = vmatpush1.msra.mxu0 0.0
      %1917 = vmatprep.subr.mxu0 0.0
      %1918 = vmatpush1.msra.mxu0 0.0
      %1919 = vmatprep.subr.mxu0 0.0
      %1920 = vmatpush1.msra.mxu0 0.0
      %1921 = vmatprep.subr.mxu0 0.0
      %1922 = vmatpush1.msra.mxu0 0.0
      %1923 = vmatprep.subr.mxu0 0.0
      %1924 = vmatpush1.msra.mxu0 0.0
      %1925 = vmatprep.subr.mxu0 0.0
      %1926 = vmatpush1.msra.mxu0 0.0
      %1927 = vmatprep.subr.mxu0 0.0
      %1928 = vmatpush1.msra.mxu0 0.0
      %1929 = vmatprep.subr.mxu0 0.0
      %1930 = vmatpush1.msra.mxu0 0.0
      %1931 = vmatprep.subr.mxu0 0.0
      %1932 = vmatpush1.msra.mxu0 0.0
      %1933 = vmatprep.subr.mxu0 0.0
      %1934 = vmatpush1.msra.mxu0 0.0
      %1935 = vmatprep.subr.mxu0 0.0
      %1936 = vmatpush1.msra.mxu0 0.0
      %1937 = vmatprep.subr.mxu0 0.0
      %1938 = vmatpush1.msra.mxu0 0.0
      %1939 = vmatprep.subr.mxu0 0.0
      %1940 = vmatpush1.msra.mxu0 0.0
      %1941 = vmatprep.subr.mxu0 0.0
      %1942 = vmatpush1.msra.mxu0 0.0
      %1943 = vmatprep.subr.mxu0 0.0
      %1944 = vmatpush1.msra.mxu0 0.0
      %1945 = vmatprep.subr.mxu0 0.0
      %1946 = vmatpush1.msra.mxu0 0.0
      %1947 = vmatprep.subr.mxu0 0.0
      %1948 = vmatpush1.msra.mxu0 0.0
      %1949 = vmatprep.subr.mxu0 0.0
      %1950 = vmatpush1.msra.mxu0 0.0
      %1951 = vmatprep.subr.mxu0 0.0
      %1952 = vmatpush1.msra.mxu0 0.0
      %1953 = vmatprep.subr.mxu0 0.0
      %1954 = vmatpush1.msra.mxu0 0.0
      %1955 = vmatprep.subr.mxu0 0.0
      %1956 = vmatpush1.msra.mxu0 0.0
      %1957 = vmatprep.subr.mxu0 0.0
      %1958 = vmatpush1.msra.mxu0 0.0
      %1959 = vmatprep.subr.mxu0 0.0
      %1960 = vmatpush1.msra.mxu0 0.0
      %1961 = vmatprep.subr.mxu0 0.0
      %1962 = vmatpush1.msra.mxu0 0.0
      %1963 = vmatprep.mubr.f32.mxu0 0.0
      %v1964 = vand.u32 %v239, 4294901760
      %1965 = vmatmul.mubr.f32.gmra.mrb[0].mxu0 %v1964
      %v1966 = vpop.f32.mrb[0].mxu0
      %v1967 = vadd.f32 %v1706, %v1966
      %v1968 = vpop.f32.mrb[0].mxu0
      %1969 = vmatprep.mubr.f32.mxu0 0.0
      %v1970 = vand.u32 %v242, 4294901760
      %1971 = vmatmul.mubr.f32.gmra.mrb[0].mxu0 %v1970
      %v1972 = vpop.f32.mrb[0].mxu0
      %v1973 = vadd.f32 %v1712, %v1972
      %v1974 = vpop.f32.mrb[0].mxu0
      %1975 = vmatprep.mubr.f32.mxu0 0.0
      %v1976 = vand.u32 %v245, 4294901760
      %1977 = vmatmul.mubr.f32.gmra.mrb[0].mxu0 %v1976
      %v1978 = vpop.f32.mrb[0].mxu0
      %v1979 = vadd.f32 %v1718, %v1978
      %v1980 = vpop.f32.mrb[0].mxu0
      %1981 = vmatprep.mubr.f32.mxu0 0.0
      %v1982 = vand.u32 %v248, 4294901760
      %1983 = vmatmul.mubr.f32.gmra.mrb[0].mxu0 %v1982
      %v1984 = vpop.f32.mrb[0].mxu0
      %v1985 = vadd.f32 %v1724, %v1984
      %v1986 = vpop.f32.mrb[0].mxu0
      %1987 = vmatprep.mubr.f32.mxu0 0.0
      %v1988 = vand.u32 %v251, 4294901760
      %1989 = vmatmul.mubr.f32.gmra.mrb[0].mxu0 %v1988
      %v1990 = vpop.f32.mrb[0].mxu0
      %v1991 = vadd.f32 %v1730, %v1990
      %v1992 = vpop.f32.mrb[0].mxu0
      %1993 = vmatprep.mubr.f32.mxu0 0.0
      %v1994 = vand.u32 %v254, 4294901760
      %1995 = vmatmul.mubr.f32.gmra.mrb[0].mxu0 %v1994
      %v1996 = vpop.f32.mrb[0].mxu0
      %v1997 = vadd.f32 %v1736, %v1996
      %v1998 = vpop.f32.mrb[0].mxu0
      %1999 = vmatprep.mubr.f32.mxu0 0.0
      %v2000 = vand.u32 %v257, 4294901760
      %2001 = vmatmul.mubr.f32.gmra.mrb[0].mxu0 %v2000
      %v2002 = vpop.f32.mrb[0].mxu0
      %v2003 = vadd.f32 %v1742, %v2002
      %v2004 = vpop.f32.mrb[0].mxu0
      %2005 = vmatprep.mubr.f32.mxu0 0.0
      %v2006 = vand.u32 %v260, 4294901760
      %2007 = vmatmul.mubr.f32.gmra.mrb[0].mxu0 %v2006
      %v2008 = vpop.f32.mrb[0].mxu0
      %v2009 = vadd.f32 %v1748, %v2008
      %v2010 = vpop.f32.mrb[0].mxu0
      %2011 = vmatprep.mubr.f32.mxu0 0.0
      %v2012 = vand.u32 %v263, 4294901760
      %2013 = vmatmul.mubr.f32.gmra.mrb[0].mxu0 %v2012
      %v2014 = vpop.f32.mrb[0].mxu0
      %v2015 = vadd.f32 %v1754, %v2014
      %v2016 = vpop.f32.mrb[0].mxu0
      %2017 = vmatprep.mubr.f32.mxu0 0.0
      %v2018 = vand.u32 %v266, 4294901760
      %2019 = vmatmul.mubr.f32.gmra.mrb[0].mxu0 %v2018
      %v2020 = vpop.f32.mrb[0].mxu0
      %v2021 = vadd.f32 %v1760, %v2020
      %v2022 = vpop.f32.mrb[0].mxu0
      %2023 = vmatprep.mubr.f32.mxu0 0.0
      %v2024 = vand.u32 %v269, 4294901760
      %2025 = vmatmul.mubr.f32.gmra.mrb[0].mxu0 %v2024
      %v2026 = vpop.f32.mrb[0].mxu0
      %v2027 = vadd.f32 %v1766, %v2026
      %v2028 = vpop.f32.mrb[0].mxu0
      %2029 = vmatprep.mubr.f32.mxu0 0.0
      %v2030 = vand.u32 %v272, 4294901760
      %2031 = vmatmul.mubr.f32.gmra.mrb[0].mxu0 %v2030
      %v2032 = vpop.f32.mrb[0].mxu0
      %v2033 = vadd.f32 %v1772, %v2032
      %v2034 = vpop.f32.mrb[0].mxu0
      %2035 = vmatprep.mubr.f32.mxu0 0.0
      %v2036 = vand.u32 %v275, 4294901760
      %2037 = vmatmul.mubr.f32.gmra.mrb[0].mxu0 %v2036
      %v2038 = vpop.f32.mrb[0].mxu0
      %v2039 = vadd.f32 %v1778, %v2038
      %v2040 = vpop.f32.mrb[0].mxu0
      %2041 = vmatprep.mubr.f32.mxu0 0.0
      %v2042 = vand.u32 %v278, 4294901760
      %2043 = vmatmul.mubr.f32.gmra.mrb[0].mxu0 %v2042
      %v2044 = vpop.f32.mrb[0].mxu0
      %v2045 = vadd.f32 %v1784, %v2044
      %v2046 = vpop.f32.mrb[0].mxu0
      %2047 = vmatprep.mubr.f32.mxu0 0.0
      %v2048 = vand.u32 %v281, 4294901760
      %2049 = vmatmul.mubr.f32.gmra.mrb[0].mxu0 %v2048
      %v2050 = vpop.f32.mrb[0].mxu0
      %v2051 = vadd.f32 %v1790, %v2050
      %v2052 = vpop.f32.mrb[0].mxu0
      %2053 = vmatprep.mubr.f32.mxu0 0.0
      %v2054 = vand.u32 %v284, 4294901760
      %2055 = vmatmul.mubr.f32.gmra.mrb[0].mxu0 %v2054
      %v2056 = vpop.f32.mrb[0].mxu0
      %v2057 = vadd.f32 %v1796, %v2056
      %v2058 = vpop.f32.mrb[0].mxu0
      %2059 = vmatprep.mubr.f32.mxu0 0.0
      %v2060 = vand.u32 %v287, 4294901760
      %2061 = vmatmul.mubr.f32.gmra.mrb[0].mxu0 %v2060
      %v2062 = vpop.f32.mrb[0].mxu0
      %v2063 = vadd.f32 %v1802, %v2062
      %v2064 = vpop.f32.mrb[0].mxu0
      %2065 = vmatprep.mubr.f32.mxu0 0.0
      %v2066 = vand.u32 %v290, 4294901760
      %2067 = vmatmul.mubr.f32.gmra.mrb[0].mxu0 %v2066
      %v2068 = vpop.f32.mrb[0].mxu0
      %v2069 = vadd.f32 %v1808, %v2068
      %v2070 = vpop.f32.mrb[0].mxu0
      %2071 = vmatprep.mubr.f32.mxu0 0.0
      %v2072 = vand.u32 %v293, 4294901760
      %2073 = vmatmul.mubr.f32.gmra.mrb[0].mxu0 %v2072
      %v2074 = vpop.f32.mrb[0].mxu0
      %v2075 = vadd.f32 %v1814, %v2074
      %v2076 = vpop.f32.mrb[0].mxu0
      %2077 = vmatprep.mubr.f32.mxu0 0.0
      %v2078 = vand.u32 %v296, 4294901760
      %2079 = vmatmul.mubr.f32.gmra.mrb[0].mxu0 %v2078
      %v2080 = vpop.f32.mrb[0].mxu0
      %v2081 = vadd.f32 %v1820, %v2080
      %v2082 = vpop.f32.mrb[0].mxu0
      %2083 = vmatprep.mubr.f32.mxu0 0.0
      %v2084 = vand.u32 %v299, 4294901760
      %2085 = vmatmul.mubr.f32.gmra.mrb[0].mxu0 %v2084
      %v2086 = vpop.f32.mrb[0].mxu0
      %v2087 = vadd.f32 %v1826, %v2086
      %v2088 = vpop.f32.mrb[0].mxu0
      %2089 = vmatprep.mubr.f32.mxu0 0.0
      %v2090 = vand.u32 %v302, 4294901760
      %2091 = vmatmul.mubr.f32.gmra.mrb[0].mxu0 %v2090
      %v2092 = vpop.f32.mrb[0].mxu0
      %v2093 = vadd.f32 %v1832, %v2092
      %v2094 = vpop.f32.mrb[0].mxu0
      %2095 = vmatprep.mubr.f32.mxu0 0.0
      %v2096 = vand.u32 %v305, 4294901760
      %2097 = vmatmul.mubr.f32.gmra.mrb[0].mxu0 %v2096
      %v2098 = vpop.f32.mrb[0].mxu0
      %v2099 = vadd.f32 %v1838, %v2098
      %v2100 = vpop.f32.mrb[0].mxu0
      %2101 = vmatprep.mubr.f32.mxu0 0.0
      %v2102 = vand.u32 %v308, 4294901760
      %2103 = vmatmul.mubr.f32.gmra.mrb[0].mxu0 %v2102
      %v2104 = vpop.f32.mrb[0].mxu0
      %v2105 = vadd.f32 %v1844, %v2104
      %v2106 = vpop.f32.mrb[0].mxu0
      %2107 = vmatprep.mubr.f32.mxu0 0.0
      %v2108 = vand.u32 %v311, 4294901760
      %2109 = vmatmul.mubr.f32.gmra.mrb[0].mxu0 %v2108
      %v2110 = vpop.f32.mrb[0].mxu0
      %v2111 = vadd.f32 %v1850, %v2110
      %v2112 = vpop.f32.mrb[0].mxu0
      %2113 = vmatprep.mubr.f32.mxu0 0.0
      %v2114 = vand.u32 %v314, 4294901760
      %2115 = vmatmul.mubr.f32.gmra.mrb[0].mxu0 %v2114
      %v2116 = vpop.f32.mrb[0].mxu0
      %v2117 = vadd.f32 %v1856, %v2116
      %v2118 = vpop.f32.mrb[0].mxu0
      %2119 = vmatprep.mubr.f32.mxu0 0.0
      %v2120 = vand.u32 %v317, 4294901760
      %2121 = vmatmul.mubr.f32.gmra.mrb[0].mxu0 %v2120
      %v2122 = vpop.f32.mrb[0].mxu0
      %v2123 = vadd.f32 %v1862, %v2122
      %v2124 = vpop.f32.mrb[0].mxu0
      %2125 = vmatprep.mubr.f32.mxu0 0.0
      %v2126 = vand.u32 %v320, 4294901760
      %2127 = vmatmul.mubr.f32.gmra.mrb[0].mxu0 %v2126
      %v2128 = vpop.f32.mrb[0].mxu0
      %v2129 = vadd.f32 %v1868, %v2128
      %v2130 = vpop.f32.mrb[0].mxu0
      %2131 = vmatprep.mubr.f32.mxu0 0.0
      %v2132 = vand.u32 %v323, 4294901760
      %2133 = vmatmul.mubr.f32.gmra.mrb[0].mxu0 %v2132
      %v2134 = vpop.f32.mrb[0].mxu0
      %v2135 = vadd.f32 %v1874, %v2134
      %v2136 = vpop.f32.mrb[0].mxu0
      %2137 = vmatprep.mubr.f32.mxu0 0.0
      %v2138 = vand.u32 %v326, 4294901760
      %2139 = vmatmul.mubr.f32.gmra.mrb[0].mxu0 %v2138
      %v2140 = vpop.f32.mrb[0].mxu0
      %v2141 = vadd.f32 %v1880, %v2140
      %v2142 = vpop.f32.mrb[0].mxu0
      %2143 = vmatprep.mubr.f32.mxu0 0.0
      %v2144 = vand.u32 %v329, 4294901760
      %2145 = vmatmul.mubr.f32.gmra.mrb[0].mxu0 %v2144
      %v2146 = vpop.f32.mrb[0].mxu0
      %v2147 = vadd.f32 %v1886, %v2146
      %v2148 = vpop.f32.mrb[0].mxu0
      %2149 = vmatprep.mubr.f32.mxu0 0.0
      %v2150 = vand.u32 %v332, 4294901760
      %2151 = vmatmul.mubr.f32.gmra.mrb[0].mxu0 %v2150
      %v2152 = vpop.f32.mrb[0].mxu0
      %v2153 = vadd.f32 %v1892, %v2152
      %v2154 = vpop.f32.mrb[0].mxu0
      %2155 = vdwg.mxu0
      %v2156 = vld [vmem:[%s2] sm:$0x1]
      %v2158 = vlaneseq
      %v2159 = vshrl.u32 %v2158, 7
      %v2160 = vsub.s32 0, %v2159
      %v2161 = vrot.slane %v2156, %v2160
      %v2163 = vmul.f32 %v1967, %v2161
      %v2164 = vmul.f32 %v1973, %v2161
      %v2165 = vmul.f32 %v1979, %v2161
      %v2166 = vmul.f32 %v1985, %v2161
      %v2167 = vmul.f32 %v1991, %v2161
      %v2168 = vmul.f32 %v1997, %v2161
      %v2169 = vmul.f32 %v2003, %v2161
      %v2170 = vmul.f32 %v2009, %v2161
      %v2171 = vmul.f32 %v2015, %v2161
      %v2172 = vmul.f32 %v2021, %v2161
      %v2173 = vmul.f32 %v2027, %v2161
      %v2174 = vmul.f32 %v2033, %v2161
      %v2175 = vmul.f32 %v2039, %v2161
      %v2176 = vmul.f32 %v2045, %v2161
      %v2177 = vmul.f32 %v2051, %v2161
      %v2178 = vmul.f32 %v2057, %v2161
      %v2179 = vmul.f32 %v2063, %v2161
      %v2180 = vmul.f32 %v2069, %v2161
      %v2181 = vmul.f32 %v2075, %v2161
      %v2182 = vmul.f32 %v2081, %v2161
      %v2183 = vmul.f32 %v2087, %v2161
      %v2184 = vmul.f32 %v2093, %v2161
      %v2185 = vmul.f32 %v2099, %v2161
      %v2186 = vmul.f32 %v2105, %v2161
      %v2187 = vmul.f32 %v2111, %v2161
      %v2188 = vmul.f32 %v2117, %v2161
      %v2189 = vmul.f32 %v2123, %v2161
      %v2190 = vmul.f32 %v2129, %v2161
      %v2191 = vmul.f32 %v2135, %v2161
      %v2192 = vmul.f32 %v2141, %v2161
      %v2193 = vmul.f32 %v2147, %v2161
      %v2194 = vmul.f32 %v2153, %v2161
      %v2195 = vld [vmem:[%s3] sm:$0x1]
      %v2197 = vlaneseq
      %v2198 = vshrl.u32 %v2197, 7
      %v2199 = vsub.s32 0, %v2198
      %v2200 = vrot.slane %v2195, %v2199
      %v2202 = vadd.f32 %v2163, %v2200
      %v2203 = vadd.f32 %v2164, %v2200
      %v2204 = vadd.f32 %v2165, %v2200
      %v2205 = vadd.f32 %v2166, %v2200
      %v2206 = vadd.f32 %v2167, %v2200
      %v2207 = vadd.f32 %v2168, %v2200
      %v2208 = vadd.f32 %v2169, %v2200
      %v2209 = vadd.f32 %v2170, %v2200
      %v2210 = vadd.f32 %v2171, %v2200
      %v2211 = vadd.f32 %v2172, %v2200
      %v2212 = vadd.f32 %v2173, %v2200
      %v2213 = vadd.f32 %v2174, %v2200
      %v2214 = vadd.f32 %v2175, %v2200
      %v2215 = vadd.f32 %v2176, %v2200
      %v2216 = vadd.f32 %v2177, %v2200
      %v2217 = vadd.f32 %v2178, %v2200
      %v2218 = vadd.f32 %v2179, %v2200
      %v2219 = vadd.f32 %v2180, %v2200
      %v2220 = vadd.f32 %v2181, %v2200
      %v2221 = vadd.f32 %v2182, %v2200
      %v2222 = vadd.f32 %v2183, %v2200
      %v2223 = vadd.f32 %v2184, %v2200
      %v2224 = vadd.f32 %v2185, %v2200
      %v2225 = vadd.f32 %v2186, %v2200
      %v2226 = vadd.f32 %v2187, %v2200
      %v2227 = vadd.f32 %v2188, %v2200
      %v2228 = vadd.f32 %v2189, %v2200
      %v2229 = vadd.f32 %v2190, %v2200
      %v2230 = vadd.f32 %v2191, %v2200
      %v2231 = vadd.f32 %v2192, %v2200
      %v2232 = vadd.f32 %v2193, %v2200
      %v2233 = vadd.f32 %v2194, %v2200
      %v2234 = vmax.f32 %v2202, 0.0
      %v2235 = vmax.f32 %v2203, 0.0
      %v2236 = vmax.f32 %v2204, 0.0
      %v2237 = vmax.f32 %v2205, 0.0
      %v2238 = vmax.f32 %v2206, 0.0
      %v2239 = vmax.f32 %v2207, 0.0
      %v2240 = vmax.f32 %v2208, 0.0
      %v2241 = vmax.f32 %v2209, 0.0
      %v2242 = vmax.f32 %v2210, 0.0
      %v2243 = vmax.f32 %v2211, 0.0
      %v2244 = vmax.f32 %v2212, 0.0
      %v2245 = vmax.f32 %v2213, 0.0
      %v2246 = vmax.f32 %v2214, 0.0
      %v2247 = vmax.f32 %v2215, 0.0
      %v2248 = vmax.f32 %v2216, 0.0
      %v2249 = vmax.f32 %v2217, 0.0
      %v2250 = vmax.f32 %v2218, 0.0
      %v2251 = vmax.f32 %v2219, 0.0
      %v2252 = vmax.f32 %v2220, 0.0
      %v2253 = vmax.f32 %v2221, 0.0
      %v2254 = vmax.f32 %v2222, 0.0
      %v2255 = vmax.f32 %v2223, 0.0
      %v2256 = vmax.f32 %v2224, 0.0
      %v2257 = vmax.f32 %v2225, 0.0
      %v2258 = vmax.f32 %v2226, 0.0
      %v2259 = vmax.f32 %v2227, 0.0
      %v2260 = vmax.f32 %v2228, 0.0
      %v2261 = vmax.f32 %v2229, 0.0
      %v2262 = vmax.f32 %v2230, 0.0
      %v2263 = vmax.f32 %v2231, 0.0
      %v2264 = vmax.f32 %v2232, 0.0
      %v2265 = vmax.f32 %v2233, 0.0
      %vm2266 = vcmask 130048
      %2267 = vst.msk [vmem:[%s199] sm:$0xff] %vm2266, %v2234
      %2268 = vst.msk [vmem:[%s199 + $0x8] sm:$0xff] %vm2266, %v2235
      %2269 = vst.msk [vmem:[%s199 + $0x10] sm:$0xff] %vm2266, %v2236
      %2270 = vst.msk [vmem:[%s199 + $0x18] sm:$0xff] %vm2266, %v2237
      %2271 = vst.msk [vmem:[%s199 + $0x20] sm:$0xff] %vm2266, %v2238
      %2272 = vst.msk [vmem:[%s199 + $0x28] sm:$0xff] %vm2266, %v2239
      %2273 = vst.msk [vmem:[%s199 + $0x30] sm:$0xff] %vm2266, %v2240
      %2274 = vst.msk [vmem:[%s199 + $0x38] sm:$0xff] %vm2266, %v2241
      %2275 = vst.msk [vmem:[%s199 + $0x40] sm:$0xff] %vm2266, %v2242
      %2276 = vst.msk [vmem:[%s199 + $0x48] sm:$0xff] %vm2266, %v2243
      %2277 = vst.msk [vmem:[%s199 + $0x50] sm:$0xff] %vm2266, %v2244
      %2278 = vst.msk [vmem:[%s199 + $0x58] sm:$0xff] %vm2266, %v2245
      %2279 = vst.msk [vmem:[%s199 + $0x60] sm:$0xff] %vm2266, %v2246
      %2280 = vst.msk [vmem:[%s199 + $0x68] sm:$0xff] %vm2266, %v2247
      %2281 = vst.msk [vmem:[%s199 + $0x70] sm:$0xff] %vm2266, %v2248
      %2282 = vst.msk [vmem:[%s199 + $0x78] sm:$0xff] %vm2266, %v2249
      %2283 = vst.msk [vmem:[%s199 + $0x80] sm:$0xff] %vm2266, %v2250
      %2284 = vst.msk [vmem:[%s199 + $0x88] sm:$0xff] %vm2266, %v2251
      %2285 = vst.msk [vmem:[%s199 + $0x90] sm:$0xff] %vm2266, %v2252
      %2286 = vst.msk [vmem:[%s199 + $0x98] sm:$0xff] %vm2266, %v2253
      %2287 = vst.msk [vmem:[%s199 + $0xa0] sm:$0xff] %vm2266, %v2254
      %2288 = vst.msk [vmem:[%s199 + $0xa8] sm:$0xff] %vm2266, %v2255
      %2289 = vst.msk [vmem:[%s199 + $0xb0] sm:$0xff] %vm2266, %v2256
      %2290 = vst.msk [vmem:[%s199 + $0xb8] sm:$0xff] %vm2266, %v2257
      %2291 = vst.msk [vmem:[%s199 + $0xc0] sm:$0xff] %vm2266, %v2258
      %2292 = vst.msk [vmem:[%s199 + $0xc8] sm:$0xff] %vm2266, %v2259
      %2293 = vst.msk [vmem:[%s199 + $0xd0] sm:$0xff] %vm2266, %v2260
      %2294 = vst.msk [vmem:[%s199 + $0xd8] sm:$0xff] %vm2266, %v2261
      %2295 = vst.msk [vmem:[%s199 + $0xe0] sm:$0xff] %vm2266, %v2262
      %2296 = vst.msk [vmem:[%s199 + $0xe8] sm:$0xff] %vm2266, %v2263
      %2297 = vst.msk [vmem:[%s199 + $0xf0] sm:$0xff] %vm2266, %v2264
      %2298 = vst.msk [vmem:[%s199 + $0xf8] sm:$0xff] %vm2266, %v2265
      %s2299 = smul.u32 32, %s15
      %p2300 = scmp.lt.s32.totalorder %s2299, 63
      %s2301 = scalar_select %p2300, %s2299, 63
      %s2302 = smul.addr %s2301, 8
      %s2303 = scalar_lea.vmem %s4, %s2302
      // Predicated region
      $region37: #{tpu_custom_call.1} parent=35 // pred_check
        %p2304 = pneg %p122
      $region38: #{tpu_custom_call.1} parent=35 // pred_check_branch
        %2306 = sbr.rel (%p2304) target = $region40
      $region39: #{tpu_custom_call.1} parent=35 // pred_region
        %s2307 = smul.u32 32, %s15
      $region40: #{tpu_custom_call.1} parent=35 // pred_fallthru
        _
    $region36: #{tpu_custom_call.1} parent=5 // pred_fallthru
      _
    %p2308 = scmp.le.s32.totalorder 2, %s10
    // Predicated region
    $region41: #{tpu_custom_call.1} parent=5 // pred_check
      %p2309 = pneg %p2308
    $region42: #{tpu_custom_call.1} parent=5 // pred_check_branch
      %2311 = sbr.rel (%p2309) target = $region44
    $region43: #{tpu_custom_call.1} parent=5 // pred_region
      %s2312 = ssub.s32 %s10, 2
      // Predicated region
      $region45: #{tpu_custom_call.1} parent=43 // pred_check
        %p2313 = pneg %p128
      $region46: #{tpu_custom_call.1} parent=43 // pred_check_branch
        %2315 = sbr.rel (%p2313) target = $region48
      $region47: #{tpu_custom_call.1} parent=43 // pred_region
        %s2316 = smul.u32 32, %s16
        %p2317 = scmp.lt.s32.totalorder %s2316, 63
        %s2318 = scalar_select %p2317, %s2316, 63
        %s2319 = smul.addr %s2318, 8
        %s2320 = scalar_lea.vmem %s4, %s2319
      $region48: #{tpu_custom_call.1} parent=43 // pred_fallthru
        _
    $region44: #{tpu_custom_call.1} parent=5 // pred_fallthru
      _
  $region6: #{tpu_custom_call.1} parent=0 // loop_footer
    %s14 = sadd.s32 1, %s10
  $region7: #{tpu_custom_call.1} parent=0 // loop_footer_branch
    %9 = sbr.rel target = $region3
  $region8: #{tpu_custom_call.1} parent=0 // loop_exit
    _

</llo_original>
